<compile_context>
chip_gen: v5e
topology: v5e:2x2
jax: 0.10.0
libtpu: 0.0.40
codegen_flags: <defaults>
</compile_context>

<pallas_src>
import functools

import numpy as np
import jax
import jax.numpy as jnp
from jax import lax
from jax.experimental import pallas as pl
from jax.experimental.pallas import tpu as pltpu


# ----------------------------------------------------------------------------
# Static tap metadata for a 3x3 SAME conv on a row-major flattened (H*W,) axis.
# For tap (dh, dw) with offsets (oh, ow) = (dh-1, dw-1):
#   shifted[s] = a[s + oh*W + ow]  (valid positions), realized as a cyclic
#   roll by (-(oh*W+ow)) mod H*W plus a 0/1 validity mask for the borders.
# ----------------------------------------------------------------------------
def _make_taps(H, W):
    HW = H * W
    masks = np.zeros((9, 1, HW), np.float32)
    shifts = []
    hh, ww = np.meshgrid(np.arange(H), np.arange(W), indexing="ij")
    for dh in range(3):
        for dw in range(3):
            oh, ow = dh - 1, dw - 1
            t = dh * 3 + dw
            valid = ((hh + oh >= 0) & (hh + oh < H) &
                     (ww + ow >= 0) & (ww + ow < W))
            masks[t, 0, :] = valid.reshape(-1).astype(np.float32)
            shifts.append(int((-(oh * W + ow)) % HW))
    return masks, tuple(shifts)


# ----------------------------------------------------------------------------
# Fused kernel: one grid step = one image of the batch; the whole network
# (5 layers) runs with activations resident in VMEM / vregs.
#   x_ref : (1, Cpad, HW)        channels-first, flattened spatial (lanes=HW)
#   w_ref : (L, Cpad, 9*Cpad)    packed im2col weights (all layers)
#   b_ref : (L, Cpad, 1)         packed biases
#   m_ref : (9, 1, HW)           border-validity masks per tap
#   o_ref : (1, Cout, HW)        final activation (lane-dense store)
# ----------------------------------------------------------------------------
def _fused_unet_kernel(x_ref, w_ref, b_ref, m_ref, o_ref, *, shifts):
    num_layers = w_ref.shape[0]
    cout = o_ref.shape[1]

    # Hoisted: masks loaded once, reused by every layer.
    masks = [m_ref[t] for t in range(9)]          # each (1, HW)

    a = x_ref[0]                                   # (Cpad, HW), f32

    for layer in range(num_layers):
        # im2col patch matrix: 9 rolled + masked copies of the activation.
        taps = []
        for t, s in enumerate(shifts):
            rolled = pltpu.roll(a, s, axis=1) if s else a
            taps.append(rolled * masks[t])
        patch = jnp.concatenate(taps, axis=0)      # (9*Cpad, HW)

        # Single MXU matmul per layer (K = 9*Cpad), f32 accumulation,
        # bias + ReLU epilogue on lane-dense (Cpad, HW) tiles.
        y = jnp.dot(w_ref[layer], patch, preferred_element_type=jnp.float32)
        a = jnp.maximum(y + b_ref[layer], 0.0)

    o_ref[0] = a[:cout, :].astype(o_ref.dtype)


# ----------------------------------------------------------------------------
# Wrapper: pack weights to the im2col layout once, call the fused kernel.
# ----------------------------------------------------------------------------
def _pack_layer(w_hwio, b, cpad):
    cin, cout = w_hwio.shape[2], w_hwio.shape[3]
    wp = jnp.zeros((3, 3, cpad, cpad), jnp.float32)
    wp = wp.at[:, :, :cin, :cout].set(w_hwio.astype(jnp.float32))
    # wmat[co, (dh*3+dw)*cpad + ci] = w[dh, dw, ci, co]
    wmat = wp.reshape(9 * cpad, cpad).T            # (cpad, 9*cpad)
    bp = jnp.zeros((cpad, 1), jnp.float32).at[:cout, 0].set(
        b.astype(jnp.float32))
    return wmat, bp


def unet_basic_forward(params, x_nchw):
    layers = list(params["contract"]) + [params["mid"]] + list(params["expand"])
    N, cin0, H, W = x_nchw.shape
    HW = H * W
    assert HW % 128 == 0, "flattened spatial axis must be a multiple of 128"

    cpad = max(max(p["w"].shape[2], p["w"].shape[3]) for p in layers)
    cpad = (cpad + 7) // 8 * 8                     # sublane align
    L = len(layers)
    K = 9 * cpad
    cout_f = layers[-1]["w"].shape[3]

    packed = [_pack_layer(p["w"], p["b"], cpad) for p in layers]
    w_all = jnp.stack([w for w, _ in packed], axis=0)      # (L, cpad, K)
    b_all = jnp.stack([b for _, b in packed], axis=0)      # (L, cpad, 1)

    masks_np, shifts = _make_taps(H, W)
    masks = jnp.asarray(masks_np)                          # (9, 1, HW)

    # NCHW -> (N, Cpad, H*W): a single trivial reshape + tiny channel pad
    # of the network input (done once, not per layer).
    x_flat = jnp.pad(x_nchw.reshape(N, cin0, HW).astype(jnp.float32),
                     ((0, 0), (0, cpad - cin0), (0, 0)))

    kernel = functools.partial(_fused_unet_kernel, shifts=shifts)
    out = pl.pallas_call(
        kernel,
        out_shape=jax.ShapeDtypeStruct((N, cout_f, HW), jnp.float32),
        grid_spec=pltpu.PrefetchScalarGridSpec(
            num_scalar_prefetch=0,
            grid=(N,),
            in_specs=[
                pl.BlockSpec((1, cpad, HW), lambda n: (n, 0, 0)),
                pl.BlockSpec((L, cpad, K), lambda n: (0, 0, 0)),
                pl.BlockSpec((L, cpad, 1), lambda n: (0, 0, 0)),
                pl.BlockSpec((9, 1, HW), lambda n: (0, 0, 0)),
            ],
            out_specs=pl.BlockSpec((1, cout_f, HW), lambda n: (n, 0, 0)),
        ),
        compiler_params=pltpu.CompilerParams(
            dimension_semantics=("parallel",),        # v7x: 2 TCs, one image each
            vmem_limit_bytes=32 * 1024 * 1024),
    )(x_flat, w_all, b_all, masks)

    return out.reshape(N, cout_f, H, W)                    # back to NCHW


# ----------------------------------------------------------------------------
# Parameter construction (deterministic) mirroring unet_basic.__init__.
# ----------------------------------------------------------------------------
def _init_block_params(key, cin, cout):
    kw, kb = jax.random.split(key)
    fan_in = cin * 9
    bound = 1.0 / jnp.sqrt(fan_in)
    w = jax.random.uniform(kw, (3, 3, cin, cout), jnp.float32, -bound, bound)
    b = jax.random.uniform(kb, (cout,), jnp.float32, -bound, bound)
    return {"w": w, "b": b}


def build_unet_basic_params(key, layer_num, args):
    # The expand Sequential only composes if its blocks chain: out == in.
    if layer_num > 1:
        assert args[layer_num + 1] == args[2 * layer_num], (
            "expand blocks require args[layer_num+1] == args[2*layer_num]")
    params = {"contract": [], "mid": None, "expand": []}
    keys = iter(jax.random.split(key, 2 * layer_num + 1))
    for i in range(layer_num):
        params["contract"].append(
            _init_block_params(next(keys), args[i], args[i + 1]))
    params["mid"] = _init_block_params(
        next(keys), args[layer_num], args[layer_num + 1])
    for _ in range(layer_num + 1, 2 * layer_num + 1):
        params["expand"].append(
            _init_block_params(next(keys), args[layer_num + 1],
                               args[2 * layer_num]))
    return params


# ----------------------------------------------------------------------------
# Pure-JAX reference (sanity check of the fused Pallas kernel).
# ----------------------------------------------------------------------------
def _conv3x3_relu_ref(x_nhwc, w_hwio, b):
    y = lax.conv_general_dilated(
        x_nhwc, w_hwio, window_strides=(1, 1), padding="SAME",
        dimension_numbers=("NHWC", "HWIO", "NHWC"))
    return jnp.maximum(y + b, 0.0)


def _unet_ref(params, x_nchw):
    x = jnp.transpose(x_nchw, (0, 2, 3, 1))
    for p in params["contract"]:
        x = _conv3x3_relu_ref(x, p["w"], p["b"])
    x = _conv3x3_relu_ref(x, params["mid"]["w"], params["mid"]["b"])
    for p in params["expand"]:
        x = _conv3x3_relu_ref(x, p["w"], p["b"])
    return jnp.transpose(x, (0, 3, 1, 2))


if __name__ == "__main__":
    key = jax.random.PRNGKey(0)
    k_param, k_x = jax.random.split(key)

    # layer_num=2, channel args=(4, 8, 16, 8, 8)
    layer_num = 2
    ch_args = (4, 8, 16, 8, 8)
    params = build_unet_basic_params(k_param, layer_num, ch_args)

    # batch=2, C=4, H=W=16 (NCHW, as in PyTorch)
    x = jax.random.normal(k_x, (2, 4, 16, 16), jnp.float32)

    fwd = jax.jit(functools.partial(unet_basic_forward, params))
    out = jax.block_until_ready(fwd(x))

    ref = jax.block_until_ready(_unet_ref(params, x))
    assert out.shape == (2, ch_args[2 * layer_num], 16, 16), out.shape
    assert jnp.allclose(out, ref, atol=1e-3, rtol=1e-3), float(
        jnp.max(jnp.abs(out - ref)))

    print("KERNEL_OK")
</pallas_src>

<mosaic_0001>
module attributes {stable_mosaic.version = 11 : i64} {
  func.func @_fused_unet_kernel(%arg0: i32, %arg1: memref<1x16x256xf32, #tpu.memory_space<vmem>>, %arg2: memref<5x16x144xf32, #tpu.memory_space<vmem>>, %arg3: memref<5x16x1xf32, #tpu.memory_space<vmem>>, %arg4: memref<9x1x256xf32, #tpu.memory_space<vmem>>, %arg5: memref<1x8x256xf32, #tpu.memory_space<vmem>>) attributes {dimension_semantics = [#tpu.dimension_semantics<parallel>], iteration_bounds = array<i64: 2>, scalar_prefetch = 0 : i64, scratch_operands = 0 : i64, tpu.core_type = #tpu.core_type<tc>, window_params = [{transform_indices = @transform_0, window_bounds = array<i64: 1, 16, 256>}, {pipeline_mode = #tpu.pipeline_mode<synchronous>, transform_indices = @transform_1, window_bounds = array<i64: 5, 16, 144>}, {pipeline_mode = #tpu.pipeline_mode<synchronous>, transform_indices = @transform_2, window_bounds = array<i64: 5, 16, 1>}, {pipeline_mode = #tpu.pipeline_mode<synchronous>, transform_indices = @transform_3, window_bounds = array<i64: 9, 1, 256>}, {transform_indices = @transform_4, window_bounds = array<i64: 1, 8, 256>}]} {
    %c0 = arith.constant 0 : index
    %c0_0 = arith.constant 0 : index
    %c0_1 = arith.constant 0 : index
    %0 = vector.load %arg4[%c0, %c0_0, %c0_1] : memref<9x1x256xf32, #tpu.memory_space<vmem>>, vector<1x1x256xf32>
    %1 = vector.shape_cast %0 : vector<1x1x256xf32> to vector<1x256xf32>
    %c1 = arith.constant 1 : index
    %c0_2 = arith.constant 0 : index
    %c0_3 = arith.constant 0 : index
    %2 = vector.load %arg4[%c1, %c0_2, %c0_3] : memref<9x1x256xf32, #tpu.memory_space<vmem>>, vector<1x1x256xf32>
    %3 = vector.shape_cast %2 : vector<1x1x256xf32> to vector<1x256xf32>
    %c2 = arith.constant 2 : index
    %c0_4 = arith.constant 0 : index
    %c0_5 = arith.constant 0 : index
    %4 = vector.load %arg4[%c2, %c0_4, %c0_5] : memref<9x1x256xf32, #tpu.memory_space<vmem>>, vector<1x1x256xf32>
    %5 = vector.shape_cast %4 : vector<1x1x256xf32> to vector<1x256xf32>
    %c3 = arith.constant 3 : index
    %c0_6 = arith.constant 0 : index
    %c0_7 = arith.constant 0 : index
    %6 = vector.load %arg4[%c3, %c0_6, %c0_7] : memref<9x1x256xf32, #tpu.memory_space<vmem>>, vector<1x1x256xf32>
    %7 = vector.shape_cast %6 : vector<1x1x256xf32> to vector<1x256xf32>
    %c4 = arith.constant 4 : index
    %c0_8 = arith.constant 0 : index
    %c0_9 = arith.constant 0 : index
    %8 = vector.load %arg4[%c4, %c0_8, %c0_9] : memref<9x1x256xf32, #tpu.memory_space<vmem>>, vector<1x1x256xf32>
    %9 = vector.shape_cast %8 : vector<1x1x256xf32> to vector<1x256xf32>
    %c5 = arith.constant 5 : index
    %c0_10 = arith.constant 0 : index
    %c0_11 = arith.constant 0 : index
    %10 = vector.load %arg4[%c5, %c0_10, %c0_11] : memref<9x1x256xf32, #tpu.memory_space<vmem>>, vector<1x1x256xf32>
    %11 = vector.shape_cast %10 : vector<1x1x256xf32> to vector<1x256xf32>
    %c6 = arith.constant 6 : index
    %c0_12 = arith.constant 0 : index
    %c0_13 = arith.constant 0 : index
    %12 = vector.load %arg4[%c6, %c0_12, %c0_13] : memref<9x1x256xf32, #tpu.memory_space<vmem>>, vector<1x1x256xf32>
    %13 = vector.shape_cast %12 : vector<1x1x256xf32> to vector<1x256xf32>
    %c7 = arith.constant 7 : index
    %c0_14 = arith.constant 0 : index
    %c0_15 = arith.constant 0 : index
    %14 = vector.load %arg4[%c7, %c0_14, %c0_15] : memref<9x1x256xf32, #tpu.memory_space<vmem>>, vector<1x1x256xf32>
    %15 = vector.shape_cast %14 : vector<1x1x256xf32> to vector<1x256xf32>
    %c8 = arith.constant 8 : index
    %c0_16 = arith.constant 0 : index
    %c0_17 = arith.constant 0 : index
    %16 = vector.load %arg4[%c8, %c0_16, %c0_17] : memref<9x1x256xf32, #tpu.memory_space<vmem>>, vector<1x1x256xf32>
    %17 = vector.shape_cast %16 : vector<1x1x256xf32> to vector<1x256xf32>
    %c0_18 = arith.constant 0 : index
    %c0_19 = arith.constant 0 : index
    %c0_20 = arith.constant 0 : index
    %18 = vector.load %arg1[%c0_18, %c0_19, %c0_20] : memref<1x16x256xf32, #tpu.memory_space<vmem>>, vector<1x16x256xf32>
    %19 = vector.shape_cast %18 : vector<1x16x256xf32> to vector<16x256xf32>
    %c17_i32 = arith.constant 17 : i32
    %20 = tpu.dynamic_rotate %19 by %c17_i32 dim 1 : vector<16x256xf32>, i32 -> vector<16x256xf32>
    %21 = vector.broadcast %1 : vector<1x256xf32> to vector<16x256xf32>
    %22 = arith.mulf %20, %21 : vector<16x256xf32>
    %c16_i32 = arith.constant 16 : i32
    %23 = tpu.dynamic_rotate %19 by %c16_i32 dim 1 : vector<16x256xf32>, i32 -> vector<16x256xf32>
    %24 = vector.broadcast %3 : vector<1x256xf32> to vector<16x256xf32>
    %25 = arith.mulf %23, %24 : vector<16x256xf32>
    %c15_i32 = arith.constant 15 : i32
    %26 = tpu.dynamic_rotate %19 by %c15_i32 dim 1 : vector<16x256xf32>, i32 -> vector<16x256xf32>
    %27 = vector.broadcast %5 : vector<1x256xf32> to vector<16x256xf32>
    %28 = arith.mulf %26, %27 : vector<16x256xf32>
    %c1_i32 = arith.constant 1 : i32
    %29 = tpu.dynamic_rotate %19 by %c1_i32 dim 1 : vector<16x256xf32>, i32 -> vector<16x256xf32>
    %30 = vector.broadcast %7 : vector<1x256xf32> to vector<16x256xf32>
    %31 = arith.mulf %29, %30 : vector<16x256xf32>
    %32 = vector.broadcast %9 : vector<1x256xf32> to vector<16x256xf32>
    %33 = arith.mulf %19, %32 : vector<16x256xf32>
    %c255_i32 = arith.constant 255 : i32
    %34 = tpu.dynamic_rotate %19 by %c255_i32 dim 1 : vector<16x256xf32>, i32 -> vector<16x256xf32>
    %35 = vector.broadcast %11 : vector<1x256xf32> to vector<16x256xf32>
    %36 = arith.mulf %34, %35 : vector<16x256xf32>
    %c241_i32 = arith.constant 241 : i32
    %37 = tpu.dynamic_rotate %19 by %c241_i32 dim 1 : vector<16x256xf32>, i32 -> vector<16x256xf32>
    %38 = vector.broadcast %13 : vector<1x256xf32> to vector<16x256xf32>
    %39 = arith.mulf %37, %38 : vector<16x256xf32>
    %c240_i32 = arith.constant 240 : i32
    %40 = tpu.dynamic_rotate %19 by %c240_i32 dim 1 : vector<16x256xf32>, i32 -> vector<16x256xf32>
    %41 = vector.broadcast %15 : vector<1x256xf32> to vector<16x256xf32>
    %42 = arith.mulf %40, %41 : vector<16x256xf32>
    %c239_i32 = arith.constant 239 : i32
    %43 = tpu.dynamic_rotate %19 by %c239_i32 dim 1 : vector<16x256xf32>, i32 -> vector<16x256xf32>
    %44 = vector.broadcast %17 : vector<1x256xf32> to vector<16x256xf32>
    %45 = arith.mulf %43, %44 : vector<16x256xf32>
    %46 = tpu.concatenate %22, %25, %28, %31, %33, %36, %39, %42, %45 in 0 : vector<16x256xf32>, vector<16x256xf32>, vector<16x256xf32>, vector<16x256xf32>, vector<16x256xf32>, vector<16x256xf32>, vector<16x256xf32>, vector<16x256xf32>, vector<16x256xf32> -> vector<144x256xf32>
    %c0_21 = arith.constant 0 : index
    %c0_22 = arith.constant 0 : index
    %c0_23 = arith.constant 0 : index
    %47 = vector.load %arg2[%c0_21, %c0_22, %c0_23] : memref<5x16x144xf32, #tpu.memory_space<vmem>>, vector<1x16x144xf32>
    %48 = vector.shape_cast %47 : vector<1x16x144xf32> to vector<16x144xf32>
    %cst = arith.constant dense<0.000000e+00> : vector<16x256xf32>
    %49 = tpu.matmul %48, %46, %cst {dimension_numbers = #tpu.dot_dimension_numbers<[1], [0], [0], [1], [0, 0, 1, 1], [], []>} : vector<16x144xf32>, vector<144x256xf32>, vector<16x256xf32> -> vector<16x256xf32>
    %c0_24 = arith.constant 0 : index
    %c0_25 = arith.constant 0 : index
    %c0_26 = arith.constant 0 : index
    %50 = vector.load %arg3[%c0_24, %c0_25, %c0_26] : memref<5x16x1xf32, #tpu.memory_space<vmem>>, vector<1x16x1xf32>
    %51 = vector.shape_cast %50 : vector<1x16x1xf32> to vector<16x1xf32>
    %52 = vector.broadcast %51 : vector<16x1xf32> to vector<16x256xf32>
    %53 = arith.addf %49, %52 : vector<16x256xf32>
    %cst_27 = arith.constant 0.000000e+00 : f32
    %54 = vector.broadcast %cst_27 : f32 to vector<16x256xf32>
    %55 = arith.maximumf %53, %54 : vector<16x256xf32>
    %c17_i32_28 = arith.constant 17 : i32
    %56 = tpu.dynamic_rotate %55 by %c17_i32_28 dim 1 : vector<16x256xf32>, i32 -> vector<16x256xf32>
    %57 = vector.broadcast %1 : vector<1x256xf32> to vector<16x256xf32>
    %58 = arith.mulf %56, %57 : vector<16x256xf32>
    %c16_i32_29 = arith.constant 16 : i32
    %59 = tpu.dynamic_rotate %55 by %c16_i32_29 dim 1 : vector<16x256xf32>, i32 -> vector<16x256xf32>
    %60 = vector.broadcast %3 : vector<1x256xf32> to vector<16x256xf32>
    %61 = arith.mulf %59, %60 : vector<16x256xf32>
    %c15_i32_30 = arith.constant 15 : i32
    %62 = tpu.dynamic_rotate %55 by %c15_i32_30 dim 1 : vector<16x256xf32>, i32 -> vector<16x256xf32>
    %63 = vector.broadcast %5 : vector<1x256xf32> to vector<16x256xf32>
    %64 = arith.mulf %62, %63 : vector<16x256xf32>
    %c1_i32_31 = arith.constant 1 : i32
    %65 = tpu.dynamic_rotate %55 by %c1_i32_31 dim 1 : vector<16x256xf32>, i32 -> vector<16x256xf32>
    %66 = vector.broadcast %7 : vector<1x256xf32> to vector<16x256xf32>
    %67 = arith.mulf %65, %66 : vector<16x256xf32>
    %68 = vector.broadcast %9 : vector<1x256xf32> to vector<16x256xf32>
    %69 = arith.mulf %55, %68 : vector<16x256xf32>
    %c255_i32_32 = arith.constant 255 : i32
    %70 = tpu.dynamic_rotate %55 by %c255_i32_32 dim 1 : vector<16x256xf32>, i32 -> vector<16x256xf32>
    %71 = vector.broadcast %11 : vector<1x256xf32> to vector<16x256xf32>
    %72 = arith.mulf %70, %71 : vector<16x256xf32>
    %c241_i32_33 = arith.constant 241 : i32
    %73 = tpu.dynamic_rotate %55 by %c241_i32_33 dim 1 : vector<16x256xf32>, i32 -> vector<16x256xf32>
    %74 = vector.broadcast %13 : vector<1x256xf32> to vector<16x256xf32>
    %75 = arith.mulf %73, %74 : vector<16x256xf32>
    %c240_i32_34 = arith.constant 240 : i32
    %76 = tpu.dynamic_rotate %55 by %c240_i32_34 dim 1 : vector<16x256xf32>, i32 -> vector<16x256xf32>
    %77 = vector.broadcast %15 : vector<1x256xf32> to vector<16x256xf32>
    %78 = arith.mulf %76, %77 : vector<16x256xf32>
    %c239_i32_35 = arith.constant 239 : i32
    %79 = tpu.dynamic_rotate %55 by %c239_i32_35 dim 1 : vector<16x256xf32>, i32 -> vector<16x256xf32>
    %80 = vector.broadcast %17 : vector<1x256xf32> to vector<16x256xf32>
    %81 = arith.mulf %79, %80 : vector<16x256xf32>
    %82 = tpu.concatenate %58, %61, %64, %67, %69, %72, %75, %78, %81 in 0 : vector<16x256xf32>, vector<16x256xf32>, vector<16x256xf32>, vector<16x256xf32>, vector<16x256xf32>, vector<16x256xf32>, vector<16x256xf32>, vector<16x256xf32>, vector<16x256xf32> -> vector<144x256xf32>
    %c1_36 = arith.constant 1 : index
    %c0_37 = arith.constant 0 : index
    %c0_38 = arith.constant 0 : index
    %83 = vector.load %arg2[%c1_36, %c0_37, %c0_38] : memref<5x16x144xf32, #tpu.memory_space<vmem>>, vector<1x16x144xf32>
    %84 = vector.shape_cast %83 : vector<1x16x144xf32> to vector<16x144xf32>
    %cst_39 = arith.constant dense<0.000000e+00> : vector<16x256xf32>
    %85 = tpu.matmul %84, %82, %cst_39 {dimension_numbers = #tpu.dot_dimension_numbers<[1], [0], [0], [1], [0, 0, 1, 1], [], []>} : vector<16x144xf32>, vector<144x256xf32>, vector<16x256xf32> -> vector<16x256xf32>
    %c1_40 = arith.constant 1 : index
    %c0_41 = arith.constant 0 : index
    %c0_42 = arith.constant 0 : index
    %86 = vector.load %arg3[%c1_40, %c0_41, %c0_42] : memref<5x16x1xf32, #tpu.memory_space<vmem>>, vector<1x16x1xf32>
    %87 = vector.shape_cast %86 : vector<1x16x1xf32> to vector<16x1xf32>
    %88 = vector.broadcast %87 : vector<16x1xf32> to vector<16x256xf32>
    %89 = arith.addf %85, %88 : vector<16x256xf32>
    %cst_43 = arith.constant 0.000000e+00 : f32
    %90 = vector.broadcast %cst_43 : f32 to vector<16x256xf32>
    %91 = arith.maximumf %89, %90 : vector<16x256xf32>
    %c17_i32_44 = arith.constant 17 : i32
    %92 = tpu.dynamic_rotate %91 by %c17_i32_44 dim 1 : vector<16x256xf32>, i32 -> vector<16x256xf32>
    %93 = vector.broadcast %1 : vector<1x256xf32> to vector<16x256xf32>
    %94 = arith.mulf %92, %93 : vector<16x256xf32>
    %c16_i32_45 = arith.constant 16 : i32
    %95 = tpu.dynamic_rotate %91 by %c16_i32_45 dim 1 : vector<16x256xf32>, i32 -> vector<16x256xf32>
    %96 = vector.broadcast %3 : vector<1x256xf32> to vector<16x256xf32>
    %97 = arith.mulf %95, %96 : vector<16x256xf32>
    %c15_i32_46 = arith.constant 15 : i32
    %98 = tpu.dynamic_rotate %91 by %c15_i32_46 dim 1 : vector<16x256xf32>, i32 -> vector<16x256xf32>
    %99 = vector.broadcast %5 : vector<1x256xf32> to vector<16x256xf32>
    %100 = arith.mulf %98, %99 : vector<16x256xf32>
    %c1_i32_47 = arith.constant 1 : i32
    %101 = tpu.dynamic_rotate %91 by %c1_i32_47 dim 1 : vector<16x256xf32>, i32 -> vector<16x256xf32>
    %102 = vector.broadcast %7 : vector<1x256xf32> to vector<16x256xf32>
    %103 = arith.mulf %101, %102 : vector<16x256xf32>
    %104 = vector.broadcast %9 : vector<1x256xf32> to vector<16x256xf32>
    %105 = arith.mulf %91, %104 : vector<16x256xf32>
    %c255_i32_48 = arith.constant 255 : i32
    %106 = tpu.dynamic_rotate %91 by %c255_i32_48 dim 1 : vector<16x256xf32>, i32 -> vector<16x256xf32>
    %107 = vector.broadcast %11 : vector<1x256xf32> to vector<16x256xf32>
    %108 = arith.mulf %106, %107 : vector<16x256xf32>
    %c241_i32_49 = arith.constant 241 : i32
    %109 = tpu.dynamic_rotate %91 by %c241_i32_49 dim 1 : vector<16x256xf32>, i32 -> vector<16x256xf32>
    %110 = vector.broadcast %13 : vector<1x256xf32> to vector<16x256xf32>
    %111 = arith.mulf %109, %110 : vector<16x256xf32>
    %c240_i32_50 = arith.constant 240 : i32
    %112 = tpu.dynamic_rotate %91 by %c240_i32_50 dim 1 : vector<16x256xf32>, i32 -> vector<16x256xf32>
    %113 = vector.broadcast %15 : vector<1x256xf32> to vector<16x256xf32>
    %114 = arith.mulf %112, %113 : vector<16x256xf32>
    %c239_i32_51 = arith.constant 239 : i32
    %115 = tpu.dynamic_rotate %91 by %c239_i32_51 dim 1 : vector<16x256xf32>, i32 -> vector<16x256xf32>
    %116 = vector.broadcast %17 : vector<1x256xf32> to vector<16x256xf32>
    %117 = arith.mulf %115, %116 : vector<16x256xf32>
    %118 = tpu.concatenate %94, %97, %100, %103, %105, %108, %111, %114, %117 in 0 : vector<16x256xf32>, vector<16x256xf32>, vector<16x256xf32>, vector<16x256xf32>, vector<16x256xf32>, vector<16x256xf32>, vector<16x256xf32>, vector<16x256xf32>, vector<16x256xf32> -> vector<144x256xf32>
    %c2_52 = arith.constant 2 : index
    %c0_53 = arith.constant 0 : index
    %c0_54 = arith.constant 0 : index
    %119 = vector.load %arg2[%c2_52, %c0_53, %c0_54] : memref<5x16x144xf32, #tpu.memory_space<vmem>>, vector<1x16x144xf32>
    %120 = vector.shape_cast %119 : vector<1x16x144xf32> to vector<16x144xf32>
    %cst_55 = arith.constant dense<0.000000e+00> : vector<16x256xf32>
    %121 = tpu.matmul %120, %118, %cst_55 {dimension_numbers = #tpu.dot_dimension_numbers<[1], [0], [0], [1], [0, 0, 1, 1], [], []>} : vector<16x144xf32>, vector<144x256xf32>, vector<16x256xf32> -> vector<16x256xf32>
    %c2_56 = arith.constant 2 : index
    %c0_57 = arith.constant 0 : index
    %c0_58 = arith.constant 0 : index
    %122 = vector.load %arg3[%c2_56, %c0_57, %c0_58] : memref<5x16x1xf32, #tpu.memory_space<vmem>>, vector<1x16x1xf32>
    %123 = vector.shape_cast %122 : vector<1x16x1xf32> to vector<16x1xf32>
    %124 = vector.broadcast %123 : vector<16x1xf32> to vector<16x256xf32>
    %125 = arith.addf %121, %124 : vector<16x256xf32>
    %cst_59 = arith.constant 0.000000e+00 : f32
    %126 = vector.broadcast %cst_59 : f32 to vector<16x256xf32>
    %127 = arith.maximumf %125, %126 : vector<16x256xf32>
    %c17_i32_60 = arith.constant 17 : i32
    %128 = tpu.dynamic_rotate %127 by %c17_i32_60 dim 1 : vector<16x256xf32>, i32 -> vector<16x256xf32>
    %129 = vector.broadcast %1 : vector<1x256xf32> to vector<16x256xf32>
    %130 = arith.mulf %128, %129 : vector<16x256xf32>
    %c16_i32_61 = arith.constant 16 : i32
    %131 = tpu.dynamic_rotate %127 by %c16_i32_61 dim 1 : vector<16x256xf32>, i32 -> vector<16x256xf32>
    %132 = vector.broadcast %3 : vector<1x256xf32> to vector<16x256xf32>
    %133 = arith.mulf %131, %132 : vector<16x256xf32>
    %c15_i32_62 = arith.constant 15 : i32
    %134 = tpu.dynamic_rotate %127 by %c15_i32_62 dim 1 : vector<16x256xf32>, i32 -> vector<16x256xf32>
    %135 = vector.broadcast %5 : vector<1x256xf32> to vector<16x256xf32>
    %136 = arith.mulf %134, %135 : vector<16x256xf32>
    %c1_i32_63 = arith.constant 1 : i32
    %137 = tpu.dynamic_rotate %127 by %c1_i32_63 dim 1 : vector<16x256xf32>, i32 -> vector<16x256xf32>
    %138 = vector.broadcast %7 : vector<1x256xf32> to vector<16x256xf32>
    %139 = arith.mulf %137, %138 : vector<16x256xf32>
    %140 = vector.broadcast %9 : vector<1x256xf32> to vector<16x256xf32>
    %141 = arith.mulf %127, %140 : vector<16x256xf32>
    %c255_i32_64 = arith.constant 255 : i32
    %142 = tpu.dynamic_rotate %127 by %c255_i32_64 dim 1 : vector<16x256xf32>, i32 -> vector<16x256xf32>
    %143 = vector.broadcast %11 : vector<1x256xf32> to vector<16x256xf32>
    %144 = arith.mulf %142, %143 : vector<16x256xf32>
    %c241_i32_65 = arith.constant 241 : i32
    %145 = tpu.dynamic_rotate %127 by %c241_i32_65 dim 1 : vector<16x256xf32>, i32 -> vector<16x256xf32>
    %146 = vector.broadcast %13 : vector<1x256xf32> to vector<16x256xf32>
    %147 = arith.mulf %145, %146 : vector<16x256xf32>
    %c240_i32_66 = arith.constant 240 : i32
    %148 = tpu.dynamic_rotate %127 by %c240_i32_66 dim 1 : vector<16x256xf32>, i32 -> vector<16x256xf32>
    %149 = vector.broadcast %15 : vector<1x256xf32> to vector<16x256xf32>
    %150 = arith.mulf %148, %149 : vector<16x256xf32>
    %c239_i32_67 = arith.constant 239 : i32
    %151 = tpu.dynamic_rotate %127 by %c239_i32_67 dim 1 : vector<16x256xf32>, i32 -> vector<16x256xf32>
    %152 = vector.broadcast %17 : vector<1x256xf32> to vector<16x256xf32>
    %153 = arith.mulf %151, %152 : vector<16x256xf32>
    %154 = tpu.concatenate %130, %133, %136, %139, %141, %144, %147, %150, %153 in 0 : vector<16x256xf32>, vector<16x256xf32>, vector<16x256xf32>, vector<16x256xf32>, vector<16x256xf32>, vector<16x256xf32>, vector<16x256xf32>, vector<16x256xf32>, vector<16x256xf32> -> vector<144x256xf32>
    %c3_68 = arith.constant 3 : index
    %c0_69 = arith.constant 0 : index
    %c0_70 = arith.constant 0 : index
    %155 = vector.load %arg2[%c3_68, %c0_69, %c0_70] : memref<5x16x144xf32, #tpu.memory_space<vmem>>, vector<1x16x144xf32>
    %156 = vector.shape_cast %155 : vector<1x16x144xf32> to vector<16x144xf32>
    %cst_71 = arith.constant dense<0.000000e+00> : vector<16x256xf32>
    %157 = tpu.matmul %156, %154, %cst_71 {dimension_numbers = #tpu.dot_dimension_numbers<[1], [0], [0], [1], [0, 0, 1, 1], [], []>} : vector<16x144xf32>, vector<144x256xf32>, vector<16x256xf32> -> vector<16x256xf32>
    %c3_72 = arith.constant 3 : index
    %c0_73 = arith.constant 0 : index
    %c0_74 = arith.constant 0 : index
    %158 = vector.load %arg3[%c3_72, %c0_73, %c0_74] : memref<5x16x1xf32, #tpu.memory_space<vmem>>, vector<1x16x1xf32>
    %159 = vector.shape_cast %158 : vector<1x16x1xf32> to vector<16x1xf32>
    %160 = vector.broadcast %159 : vector<16x1xf32> to vector<16x256xf32>
    %161 = arith.addf %157, %160 : vector<16x256xf32>
    %cst_75 = arith.constant 0.000000e+00 : f32
    %162 = vector.broadcast %cst_75 : f32 to vector<16x256xf32>
    %163 = arith.maximumf %161, %162 : vector<16x256xf32>
    %c17_i32_76 = arith.constant 17 : i32
    %164 = tpu.dynamic_rotate %163 by %c17_i32_76 dim 1 : vector<16x256xf32>, i32 -> vector<16x256xf32>
    %165 = vector.broadcast %1 : vector<1x256xf32> to vector<16x256xf32>
    %166 = arith.mulf %164, %165 : vector<16x256xf32>
    %c16_i32_77 = arith.constant 16 : i32
    %167 = tpu.dynamic_rotate %163 by %c16_i32_77 dim 1 : vector<16x256xf32>, i32 -> vector<16x256xf32>
    %168 = vector.broadcast %3 : vector<1x256xf32> to vector<16x256xf32>
    %169 = arith.mulf %167, %168 : vector<16x256xf32>
    %c15_i32_78 = arith.constant 15 : i32
    %170 = tpu.dynamic_rotate %163 by %c15_i32_78 dim 1 : vector<16x256xf32>, i32 -> vector<16x256xf32>
    %171 = vector.broadcast %5 : vector<1x256xf32> to vector<16x256xf32>
    %172 = arith.mulf %170, %171 : vector<16x256xf32>
    %c1_i32_79 = arith.constant 1 : i32
    %173 = tpu.dynamic_rotate %163 by %c1_i32_79 dim 1 : vector<16x256xf32>, i32 -> vector<16x256xf32>
    %174 = vector.broadcast %7 : vector<1x256xf32> to vector<16x256xf32>
    %175 = arith.mulf %173, %174 : vector<16x256xf32>
    %176 = vector.broadcast %9 : vector<1x256xf32> to vector<16x256xf32>
    %177 = arith.mulf %163, %176 : vector<16x256xf32>
    %c255_i32_80 = arith.constant 255 : i32
    %178 = tpu.dynamic_rotate %163 by %c255_i32_80 dim 1 : vector<16x256xf32>, i32 -> vector<16x256xf32>
    %179 = vector.broadcast %11 : vector<1x256xf32> to vector<16x256xf32>
    %180 = arith.mulf %178, %179 : vector<16x256xf32>
    %c241_i32_81 = arith.constant 241 : i32
    %181 = tpu.dynamic_rotate %163 by %c241_i32_81 dim 1 : vector<16x256xf32>, i32 -> vector<16x256xf32>
    %182 = vector.broadcast %13 : vector<1x256xf32> to vector<16x256xf32>
    %183 = arith.mulf %181, %182 : vector<16x256xf32>
    %c240_i32_82 = arith.constant 240 : i32
    %184 = tpu.dynamic_rotate %163 by %c240_i32_82 dim 1 : vector<16x256xf32>, i32 -> vector<16x256xf32>
    %185 = vector.broadcast %15 : vector<1x256xf32> to vector<16x256xf32>
    %186 = arith.mulf %184, %185 : vector<16x256xf32>
    %c239_i32_83 = arith.constant 239 : i32
    %187 = tpu.dynamic_rotate %163 by %c239_i32_83 dim 1 : vector<16x256xf32>, i32 -> vector<16x256xf32>
    %188 = vector.broadcast %17 : vector<1x256xf32> to vector<16x256xf32>
    %189 = arith.mulf %187, %188 : vector<16x256xf32>
    %190 = tpu.concatenate %166, %169, %172, %175, %177, %180, %183, %186, %189 in 0 : vector<16x256xf32>, vector<16x256xf32>, vector<16x256xf32>, vector<16x256xf32>, vector<16x256xf32>, vector<16x256xf32>, vector<16x256xf32>, vector<16x256xf32>, vector<16x256xf32> -> vector<144x256xf32>
    %c4_84 = arith.constant 4 : index
    %c0_85 = arith.constant 0 : index
    %c0_86 = arith.constant 0 : index
    %191 = vector.load %arg2[%c4_84, %c0_85, %c0_86] : memref<5x16x144xf32, #tpu.memory_space<vmem>>, vector<1x16x144xf32>
    %192 = vector.shape_cast %191 : vector<1x16x144xf32> to vector<16x144xf32>
    %cst_87 = arith.constant dense<0.000000e+00> : vector<16x256xf32>
    %193 = tpu.matmul %192, %190, %cst_87 {dimension_numbers = #tpu.dot_dimension_numbers<[1], [0], [0], [1], [0, 0, 1, 1], [], []>} : vector<16x144xf32>, vector<144x256xf32>, vector<16x256xf32> -> vector<16x256xf32>
    %c4_88 = arith.constant 4 : index
    %c0_89 = arith.constant 0 : index
    %c0_90 = arith.constant 0 : index
    %194 = vector.load %arg3[%c4_88, %c0_89, %c0_90] : memref<5x16x1xf32, #tpu.memory_space<vmem>>, vector<1x16x1xf32>
    %195 = vector.shape_cast %194 : vector<1x16x1xf32> to vector<16x1xf32>
    %196 = vector.broadcast %195 : vector<16x1xf32> to vector<16x256xf32>
    %197 = arith.addf %193, %196 : vector<16x256xf32>
    %cst_91 = arith.constant 0.000000e+00 : f32
    %198 = vector.broadcast %cst_91 : f32 to vector<16x256xf32>
    %199 = arith.maximumf %197, %198 : vector<16x256xf32>
    %200 = vector.extract_strided_slice %199 {offsets = [0, 0], sizes = [8, 256], strides = [1, 1]} : vector<16x256xf32> to vector<8x256xf32>
    %c0_92 = arith.constant 0 : index
    %c0_93 = arith.constant 0 : index
    %c0_94 = arith.constant 0 : index
    %201 = vector.load %arg5[%c0_92, %c0_93, %c0_94] : memref<1x8x256xf32, #tpu.memory_space<vmem>>, vector<1x8x256xf32>
    %202 = vector.shape_cast %201 : vector<1x8x256xf32> to vector<8x256xf32>
    %203 = vector.shape_cast %200 : vector<8x256xf32> to vector<1x8x256xf32>
    tpu.vector_store %arg5[%c0_92, %c0_93, %c0_94], %203 {strides = array<i32>} : memref<1x8x256xf32, #tpu.memory_space<vmem>>, vector<1x8x256xf32>,
    return
  }
  func.func @transform_0(%arg0: i32) -> (i32, i32, i32) {
    %c0_i32 = arith.constant 0 : i32
    %c0_i32_0 = arith.constant 0 : i32
    %c0_i32_1 = arith.constant 0 : i32
    return %arg0, %c0_i32, %c0_i32_0 : i32, i32, i32
  }
  func.func @transform_1(%arg0: i32) -> (i32, i32, i32) {
    %c0_i32 = arith.constant 0 : i32
    %c0_i32_0 = arith.constant 0 : i32
    %c0_i32_1 = arith.constant 0 : i32
    %c0_i32_2 = arith.constant 0 : i32
    return %c0_i32, %c0_i32_0, %c0_i32_1 : i32, i32, i32
  }
  func.func @transform_2(%arg0: i32) -> (i32, i32, i32) {
    %c0_i32 = arith.constant 0 : i32
    %c0_i32_0 = arith.constant 0 : i32
    %c0_i32_1 = arith.constant 0 : i32
    %c0_i32_2 = arith.constant 0 : i32
    return %c0_i32, %c0_i32_0, %c0_i32_1 : i32, i32, i32
  }
  func.func @transform_3(%arg0: i32) -> (i32, i32, i32) {
    %c0_i32 = arith.constant 0 : i32
    %c0_i32_0 = arith.constant 0 : i32
    %c0_i32_1 = arith.constant 0 : i32
    %c0_i32_2 = arith.constant 0 : i32
    return %c0_i32, %c0_i32_0, %c0_i32_1 : i32, i32, i32
  }
  func.func @transform_4(%arg0: i32) -> (i32, i32, i32) {
    %c0_i32 = arith.constant 0 : i32
    %c0_i32_0 = arith.constant 0 : i32
    %c0_i32_1 = arith.constant 0 : i32
    return %arg0, %c0_i32, %c0_i32_0 : i32, i32, i32
  }
}

</mosaic_0001>

<llo_original>
// kernel: unet_basic_forward.1
$region0: #{unet_basic_forward.1}
  #allocation0 [shape = 'u32[]', space=smem, size = 0x4, offset = 0x4, fixed_abs, tag = 'smem constant byte address 0x4 - core index']
  #allocation1 [shape = 'u32[72,128]{1,0:T(1,128)}', space=vmem, size = 0x9000, scoped, tag = 'internal scratch']
  %s0 = inlined_call_operand.vmem [shape: f32[2,16,256], index: 0, kind: input, shape index: {}]
  %s1 = inlined_call_operand.vmem [shape: f32[5,16,144], index: 1, kind: input, shape index: {}]
  %s2 = inlined_call_operand.hbm [shape: f32[5,16,1], index: 2, kind: input, shape index: {}]
  %s3 = inlined_call_operand.vmem [shape: f32[9,1,256], index: 3, kind: input, shape index: {}]
  %s4 = inlined_call_operand.vmem [shape: f32[2,8,256], index: 4, kind: output, shape index: {}]
  %s5 = sld [smem:[#allocation0]]
  $region53: #{unet_basic_forward.1} parent=0
    _
  %s7 = ssub.s32 1, %s5
  %s8 = scalar_select 0, %s7, %s5
  $region1: #{unet_basic_forward.1} parent=0
    #allocation2 [shape = 'u8[40960]{0}', space=vmem, size = 0xa000, scoped, tag = 'input window, operand 2, single buffered']
    #allocation3 [shape = 's32[2]{0}', space=sflag, size = 0x8, scoped, tag = 'scoped memory for unet_basic_forward.1']
    %9 = vsyncpa [#allocation3], 0
    loop: start=0, step=1, limit=4
    $region2: #{unet_basic_forward.1} parent=1 // loop_pre_header
      _
    $region3: #{unet_basic_forward.1} parent=1 // loop_header
      %s11 = sphi 0, %s15
      %p12 = scmp.ge.s32.totalorder %s11, 4
      %s21 = sphi 0, %s23
      %s24 = sphi 0, %s21
      %s25 = sphi 0, %s24
      %s41 = sphi 0, %s25
      %s45 = sphi 0, %s45
      %s47 = sphi 0, %s45
      %s48 = sphi 0, %s47
      %s62 = sphi 0, %s48
      %s66 = sphi 0, %s66
      %s68 = sphi 0, %s66
      %s69 = sphi 0, %s68
      %s83 = sphi 0, %s69
      %s87 = sphi 0, %s87
      %s89 = sphi 0, %s87
      %s90 = sphi 0, %s89
      %s104 = sphi 0, %s90
      %s110 = sphi 0, %s112
      %s113 = sphi 0, %s110
      %s114 = sphi 0, %s113
      %s130 = sphi 0, %s114
    $region4: #{unet_basic_forward.1} parent=1 // loop_header_branch
      %14 = sbr.rel (%p12) target = $region8
    $region5: #{unet_basic_forward.1} parent=1 // loop_body
      %s16 = ssub.s32 %s11, 1
      %s17 = ssub.s32 %s11, 2
      %s18 = sadd.s32 %s11, 1
      %s19 = ssub.s32 %s11, %s18
      %p20 = scmp.eq.s32.totalorder %s19, 0
      %s22 = sadd.s32 %s21, 1
      %s23 = scalar_select %p20, %s21, %s22
      %p26 = pneg %p20
      %p27 = scmp.eq.s32.totalorder %s11, 1
      %p28 = por %p26, %p27
      %p29 = scmp.ne.s32.totalorder %s21, %s24
      %p30 = scmp.eq.s32.totalorder %s11, 0
      %p31 = por %p29, %p30
      %p32 = scmp.ne.s32.totalorder %s21, %s24
      %p33 = scmp.eq.s32.totalorder %s16, 1
      %p34 = por %p32, %p33
      %p35 = scmp.ne.s32.totalorder %s24, %s25
      %p36 = scmp.eq.s32.totalorder %s16, 0
      %p37 = por %p35, %p36
      %p38 = scmp.ne.s32.totalorder %s24, %s25
      %p39 = scmp.eq.s32.totalorder %s17, 1
      %p40 = por %p38, %p39
      %p42 = scmp.ne.s32.totalorder %s25, %s41
      %p43 = scmp.eq.s32.totalorder %s17, 0
      %p44 = por %p42, %p43
      %s46 = sadd.s32 %s45, 1
      %p49 = scmp.eq.s32.totalorder %s11, 1
      %p50 = scmp.ne.s32.totalorder %s45, %s47
      %p51 = scmp.eq.s32.totalorder %s11, 0
      %p52 = por %p50, %p51
      %p53 = scmp.ne.s32.totalorder %s45, %s47
      %p54 = scmp.eq.s32.totalorder %s16, 1
      %p55 = por %p53, %p54
      %p56 = scmp.ne.s32.totalorder %s47, %s48
      %p57 = scmp.eq.s32.totalorder %s16, 0
      %p58 = por %p56, %p57
      %p59 = scmp.ne.s32.totalorder %s47, %s48
      %p60 = scmp.eq.s32.totalorder %s17, 1
      %p61 = por %p59, %p60
      %p63 = scmp.ne.s32.totalorder %s48, %s62
      %p64 = scmp.eq.s32.totalorder %s17, 0
      %p65 = por %p63, %p64
      %s67 = sadd.s32 %s66, 1
      %p70 = scmp.eq.s32.totalorder %s11, 1
      %p71 = scmp.ne.s32.totalorder %s66, %s68
      %p72 = scmp.eq.s32.totalorder %s11, 0
      %p73 = por %p71, %p72
      %p74 = scmp.ne.s32.totalorder %s66, %s68
      %p75 = scmp.eq.s32.totalorder %s16, 1
      %p76 = por %p74, %p75
      %p77 = scmp.ne.s32.totalorder %s68, %s69
      %p78 = scmp.eq.s32.totalorder %s16, 0
      %p79 = por %p77, %p78
      %p80 = scmp.ne.s32.totalorder %s68, %s69
      %p81 = scmp.eq.s32.totalorder %s17, 1
      %p82 = por %p80, %p81
      %p84 = scmp.ne.s32.totalorder %s69, %s83
      %p85 = scmp.eq.s32.totalorder %s17, 0
      %p86 = por %p84, %p85
      %s88 = sadd.s32 %s87, 1
      %p91 = scmp.eq.s32.totalorder %s11, 1
      %p92 = scmp.ne.s32.totalorder %s87, %s89
      %p93 = scmp.eq.s32.totalorder %s11, 0
      %p94 = por %p92, %p93
      %p95 = scmp.ne.s32.totalorder %s87, %s89
      %p96 = scmp.eq.s32.totalorder %s16, 1
      %p97 = por %p95, %p96
      %p98 = scmp.ne.s32.totalorder %s89, %s90
      %p99 = scmp.eq.s32.totalorder %s16, 0
      %p100 = por %p98, %p99
      %p101 = scmp.ne.s32.totalorder %s89, %s90
      %p102 = scmp.eq.s32.totalorder %s17, 1
      %p103 = por %p101, %p102
      %p105 = scmp.ne.s32.totalorder %s90, %s104
      %p106 = scmp.eq.s32.totalorder %s17, 0
      %p107 = por %p105, %p106
      %s108 = ssub.s32 %s11, %s18
      %p109 = scmp.eq.s32.totalorder %s108, 0
      %s111 = sadd.s32 %s110, 1
      %s112 = scalar_select %p109, %s110, %s111
      %p115 = pneg %p109
      %p116 = scmp.eq.s32.totalorder %s11, 1
      %p117 = por %p115, %p116
      %p118 = scmp.ne.s32.totalorder %s110, %s113
      %p119 = scmp.eq.s32.totalorder %s11, 0
      %p120 = por %p118, %p119
      %p121 = scmp.ne.s32.totalorder %s110, %s113
      %p122 = scmp.eq.s32.totalorder %s16, 1
      %p123 = por %p121, %p122
      %p124 = scmp.ne.s32.totalorder %s113, %s114
      %p125 = scmp.eq.s32.totalorder %s16, 0
      %p126 = por %p124, %p125
      %p127 = scmp.ne.s32.totalorder %s113, %s114
      %p128 = scmp.eq.s32.totalorder %s17, 1
      %p129 = por %p127, %p128
      %p131 = scmp.ne.s32.totalorder %s114, %s130
      %p132 = scmp.eq.s32.totalorder %s17, 0
      %p133 = por %p131, %p132
      %p134 = scmp.le.s32.totalorder 1, %s11
      %p135 = scmp.lt.s32.totalorder %s11, 3
      %p136 = pnand %p134, %p135
      %p137 = pneg %p136
      // Predicated region
      $region9: #{unet_basic_forward.1} parent=5 // pred_check
        _
      $region10: #{unet_basic_forward.1} parent=5 // pred_check_branch
        %139 = sbr.rel (%p136) target = $region12
      $region11: #{unet_basic_forward.1} parent=5 // pred_region
        %s140 = ssub.s32 %s11, 1
        // Predicated region
        $region13: #{unet_basic_forward.1} parent=11 // pred_check
          %p141 = pneg %p58
        $region14: #{unet_basic_forward.1} parent=11 // pred_check_branch
          %143 = sbr.rel (%p141) target = $region16
        $region15: #{unet_basic_forward.1} parent=11 // pred_region
          _
        $region16: #{unet_basic_forward.1} parent=11 // pred_fallthru
          _
        // Predicated region
        $region17: #{unet_basic_forward.1} parent=11 // pred_check
          %p144 = pneg %p79
        $region18: #{unet_basic_forward.1} parent=11 // pred_check_branch
          %146 = sbr.rel (%p144) target = $region20
        $region19: #{unet_basic_forward.1} parent=11 // pred_region
          %148 = vsyncadd [#allocation3], 0
          %s149 = sshll.u32 %s2, 4
          %s150 = int_to_ptr.hbm [resolvable:$true] %s149
          %s151 = sshll.u32 [#allocation2], 4
          %s152 = int_to_ptr.vmem [resolvable:$true] %s151
          %157 = dma.hbm_to_vmem [thread:$0]  %s150, 1280, %s152, [#allocation3], 128, 128, 8
        $region20: #{unet_basic_forward.1} parent=11 // pred_fallthru
          _
        // Predicated region
        $region21: #{unet_basic_forward.1} parent=11 // pred_check
          %p158 = pneg %p100
        $region22: #{unet_basic_forward.1} parent=11 // pred_check_branch
          %160 = sbr.rel (%p158) target = $region24
        $region23: #{unet_basic_forward.1} parent=11 // pred_region
          _
        $region24: #{unet_basic_forward.1} parent=11 // pred_fallthru
          _
      $region12: #{unet_basic_forward.1} parent=5 // pred_fallthru
        _
      %p161 = scmp.lt.s32.totalorder %s11, 2
      // Predicated region
      $region25: #{unet_basic_forward.1} parent=5 // pred_check
        %p162 = pneg %p161
      $region26: #{unet_basic_forward.1} parent=5 // pred_check_branch
        %164 = sbr.rel (%p162) target = $region28
      $region27: #{unet_basic_forward.1} parent=5 // pred_region
        // Predicated region
        $region29: #{unet_basic_forward.1} parent=27 // pred_check
          %p165 = pneg %p31
        $region30: #{unet_basic_forward.1} parent=27 // pred_check_branch
          %167 = sbr.rel (%p165) target = $region32
        $region31: #{unet_basic_forward.1} parent=27 // pred_region
          %p168 = scmp.lt.s32.totalorder %s11, 1
          %s169 = scalar_select %p168, %s11, 1
          %s170 = smul.addr %s169, 4
          %s171 = smul.addr %s170, 8
          %s172 = scalar_lea.vmem %s0, %s171
        $region32: #{unet_basic_forward.1} parent=27 // pred_fallthru
          _
      $region28: #{unet_basic_forward.1} parent=5 // pred_fallthru
        _
      %p173 = scmp.le.s32.totalorder 1, %s11
      %p174 = scmp.lt.s32.totalorder %s11, 3
      %p175 = pnand %p173, %p174
      %p176 = pneg %p175
      // Predicated region
      $region33: #{unet_basic_forward.1} parent=5 // pred_check
        _
      $region34: #{unet_basic_forward.1} parent=5 // pred_check_branch
        %178 = sbr.rel (%p175) target = $region36
      $region35: #{unet_basic_forward.1} parent=5 // pred_region
        %s179 = ssub.s32 %s11, 1
        // Predicated region
        $region37: #{unet_basic_forward.1} parent=35 // pred_check
          %p180 = pneg %p79
        $region38: #{unet_basic_forward.1} parent=35 // pred_check_branch
          %182 = sbr.rel (%p180) target = $region40
        $region39: #{unet_basic_forward.1} parent=35 // pred_region
          %184 = dma.done [#allocation3], 1280
        $region40: #{unet_basic_forward.1} parent=35 // pred_fallthru
          _
        %p185 = scmp.lt.s32.totalorder %s16, 1
        %s186 = scalar_select %p185, %s16, 1
        %s187 = smul.addr %s186, 4
        %s188 = smul.addr %s187, 8
        %s189 = scalar_lea.vmem %s0, %s188
        %p190 = pneg %p37
        %p191 = pneg %p34
        %p192 = pneg %p58
        %p193 = pneg %p55
        %p194 = pneg %p79
        %p195 = pneg %p76
        %p196 = pneg %p100
        %p197 = pneg %p97
        %p198 = pneg %p126
        %p199 = pneg %p123
        %p200 = scmp.lt.s32.totalorder %s16, 1
        %s201 = scalar_select %p200, %s16, 1
        %s202 = smul.addr %s201, 2
        %s203 = smul.addr %s202, 8
        %s204 = scalar_lea.vmem %s4, %s203
        %p205 = scmp.lt.s32.totalorder %s16, 1
        %s206 = scalar_select %p205, %s16, 1
        %s207 = smul.addr %s206, 4
        %s208 = smul.addr %s207, 8
        %s209 = scalar_lea.vmem %s0, %s208
        %p210 = scmp.lt.s32.totalorder %s16, 1
        %s211 = scalar_select %p210, %s16, 1
        %s212 = smul.addr %s211, 2
        %s213 = smul.addr %s212, 8
        %s214 = scalar_lea.vmem %s4, %s213
        %v215 = vld [vmem:[%s3] sm:$0x3]
        %s216 = scalar_lea.vmem %s3, 2
        %v217 = vld [vmem:[%s216] sm:$0x3]
        %s218 = scalar_lea.vmem %s3, 4
        %v219 = vld [vmem:[%s218] sm:$0x3]
        %s220 = scalar_lea.vmem %s3, 6
        %v221 = vld [vmem:[%s220] sm:$0x3]
        %s222 = scalar_lea.vmem %s3, 8
        %v223 = vld [vmem:[%s222] sm:$0x3]
        %s224 = scalar_lea.vmem %s3, 10
        %v225 = vld [vmem:[%s224] sm:$0x3]
        %s226 = scalar_lea.vmem %s3, 12
        %v227 = vld [vmem:[%s226] sm:$0x3]
        %s228 = scalar_lea.vmem %s3, 14
        %v229 = vld [vmem:[%s228] sm:$0x3]
        %s230 = scalar_lea.vmem %s3, 16
        %v231 = vld [vmem:[%s230] sm:$0x3]
        %v232 = vld [vmem:[%s209] sm:$0xff]
        %v233 = vld [vmem:[%s209 + $0x8] sm:$0xff]
        %v234 = vld [vmem:[%s209 + $0x10] sm:$0xff]
        %v235 = vld [vmem:[%s209 + $0x18] sm:$0xff]
        %236 = vrot.lane.b32.xlu0 %v232, 17
        %v237 = vpop.permute.xlu0 %236
        %238 = vrot.lane.b32.xlu0 %v234, 17
        %v239 = vpop.permute.xlu0 %238
        %240 = vrot.lane.b32.xlu0 %v233, 17
        %v241 = vpop.permute.xlu0 %240
        %242 = vrot.lane.b32.xlu0 %v235, 17
        %v243 = vpop.permute.xlu0 %242
        %v244 = vlaneseq
        %v245 = vand.u32 %v244, 127
        %vm246 = vcmp.lt.s32.totalorder %v245, 17
        %v247 = vsel %vm246, %v237, %v241
        %v248 = vsel %vm246, %v239, %v243
        %v249 = vsel %vm246, %v241, %v237
        %v250 = vsel %vm246, %v243, %v239
        %v252 = vperm.slane %v215, 0
        %v253 = vperm.slane %v215, 1
        %v256 = vmul.f32 %v249, %v252
        %v257 = vmul.f32 %v247, %v253
        %v258 = vmul.f32 %v250, %v252
        %v259 = vmul.f32 %v248, %v253
        %260 = vrot.lane.b32.xlu0 %v232, 16
        %v261 = vpop.permute.xlu0 %260
        %262 = vrot.lane.b32.xlu0 %v234, 16
        %v263 = vpop.permute.xlu0 %262
        %264 = vrot.lane.b32.xlu0 %v233, 16
        %v265 = vpop.permute.xlu0 %264
        %266 = vrot.lane.b32.xlu0 %v235, 16
        %v267 = vpop.permute.xlu0 %266
        %vm268 = vcmp.lt.s32.totalorder %v245, 16
        %v269 = vsel %vm268, %v261, %v265
        %v270 = vsel %vm268, %v263, %v267
        %v271 = vsel %vm268, %v265, %v261
        %v272 = vsel %vm268, %v267, %v263
        %v274 = vperm.slane %v217, 0
        %v275 = vperm.slane %v217, 1
        %v278 = vmul.f32 %v271, %v274
        %v279 = vmul.f32 %v269, %v275
        %v280 = vmul.f32 %v272, %v274
        %v281 = vmul.f32 %v270, %v275
        %282 = vrot.lane.b32.xlu0 %v232, 15
        %v283 = vpop.permute.xlu0 %282
        %284 = vrot.lane.b32.xlu0 %v234, 15
        %v285 = vpop.permute.xlu0 %284
        %286 = vrot.lane.b32.xlu0 %v233, 15
        %v287 = vpop.permute.xlu0 %286
        %288 = vrot.lane.b32.xlu0 %v235, 15
        %v289 = vpop.permute.xlu0 %288
        %vm290 = vcmp.lt.s32.totalorder %v245, 15
        %v291 = vsel %vm290, %v283, %v287
        %v292 = vsel %vm290, %v285, %v289
        %v293 = vsel %vm290, %v287, %v283
        %v294 = vsel %vm290, %v289, %v285
        %v296 = vperm.slane %v219, 0
        %v297 = vperm.slane %v219, 1
        %v300 = vmul.f32 %v293, %v296
        %v301 = vmul.f32 %v291, %v297
        %v302 = vmul.f32 %v294, %v296
        %v303 = vmul.f32 %v292, %v297
        %304 = vrot.lane.b32.xlu0 %v232, 1
        %v305 = vpop.permute.xlu0 %304
        %306 = vrot.lane.b32.xlu0 %v234, 1
        %v307 = vpop.permute.xlu0 %306
        %308 = vrot.lane.b32.xlu0 %v233, 1
        %v309 = vpop.permute.xlu0 %308
        %310 = vrot.lane.b32.xlu0 %v235, 1
        %v311 = vpop.permute.xlu0 %310
        %vm312 = vcmp.lt.s32.totalorder %v245, 1
        %v313 = vsel %vm312, %v305, %v309
        %v314 = vsel %vm312, %v307, %v311
        %v315 = vsel %vm312, %v309, %v305
        %v316 = vsel %vm312, %v311, %v307
        %v318 = vperm.slane %v221, 0
        %v319 = vperm.slane %v221, 1
        %v322 = vmul.f32 %v315, %v318
        %v323 = vmul.f32 %v313, %v319
        %v324 = vmul.f32 %v316, %v318
        %v325 = vmul.f32 %v314, %v319
        %v327 = vperm.slane %v223, 0
        %v328 = vperm.slane %v223, 1
        %v331 = vmul.f32 %v232, %v327
        %v332 = vmul.f32 %v233, %v328
        %v333 = vmul.f32 %v234, %v327
        %v334 = vmul.f32 %v235, %v328
        %335 = vrot.lane.b32.xlu0 %v232, 127
        %v336 = vpop.permute.xlu0 %335
        %337 = vrot.lane.b32.xlu0 %v234, 127
        %v338 = vpop.permute.xlu0 %337
        %339 = vrot.lane.b32.xlu0 %v233, 127
        %v340 = vpop.permute.xlu0 %339
        %341 = vrot.lane.b32.xlu0 %v235, 127
        %v342 = vpop.permute.xlu0 %341
        %vm343 = vcmp.lt.s32.totalorder %v245, 127
        %v344 = vsel %vm343, %v336, %v340
        %v345 = vsel %vm343, %v338, %v342
        %v346 = vsel %vm343, %v340, %v336
        %v347 = vsel %vm343, %v342, %v338
        %v349 = vperm.slane %v225, 0
        %v350 = vperm.slane %v225, 1
        %v353 = vmul.f32 %v344, %v349
        %v354 = vmul.f32 %v346, %v350
        %v355 = vmul.f32 %v345, %v349
        %v356 = vmul.f32 %v347, %v350
        %357 = vrot.lane.b32.xlu0 %v232, 113
        %v358 = vpop.permute.xlu0 %357
        %359 = vrot.lane.b32.xlu0 %v234, 113
        %v360 = vpop.permute.xlu0 %359
        %361 = vrot.lane.b32.xlu0 %v233, 113
        %v362 = vpop.permute.xlu0 %361
        %363 = vrot.lane.b32.xlu0 %v235, 113
        %v364 = vpop.permute.xlu0 %363
        %vm365 = vcmp.lt.s32.totalorder %v245, 113
        %v366 = vsel %vm365, %v358, %v362
        %v367 = vsel %vm365, %v360, %v364
        %v368 = vsel %vm365, %v362, %v358
        %v369 = vsel %vm365, %v364, %v360
        %v371 = vperm.slane %v227, 0
        %v372 = vperm.slane %v227, 1
        %v375 = vmul.f32 %v366, %v371
        %v376 = vmul.f32 %v368, %v372
        %v377 = vmul.f32 %v367, %v371
        %v378 = vmul.f32 %v369, %v372
        %379 = vrot.lane.b32.xlu0 %v232, 112
        %v380 = vpop.permute.xlu0 %379
        %381 = vrot.lane.b32.xlu0 %v234, 112
        %v382 = vpop.permute.xlu0 %381
        %383 = vrot.lane.b32.xlu0 %v233, 112
        %v384 = vpop.permute.xlu0 %383
        %385 = vrot.lane.b32.xlu0 %v235, 112
        %v386 = vpop.permute.xlu0 %385
        %vm387 = vcmp.lt.s32.totalorder %v245, 112
        %v388 = vsel %vm387, %v380, %v384
        %v389 = vsel %vm387, %v382, %v386
        %v390 = vsel %vm387, %v384, %v380
        %v391 = vsel %vm387, %v386, %v382
        %v393 = vperm.slane %v229, 0
        %v394 = vperm.slane %v229, 1
        %v397 = vmul.f32 %v388, %v393
        %v398 = vmul.f32 %v390, %v394
        %v399 = vmul.f32 %v389, %v393
        %v400 = vmul.f32 %v391, %v394
        %401 = vrot.lane.b32.xlu0 %v232, 111
        %v402 = vpop.permute.xlu0 %401
        %403 = vrot.lane.b32.xlu0 %v234, 111
        %v404 = vpop.permute.xlu0 %403
        %405 = vrot.lane.b32.xlu0 %v233, 111
        %v406 = vpop.permute.xlu0 %405
        %407 = vrot.lane.b32.xlu0 %v235, 111
        %v408 = vpop.permute.xlu0 %407
        %vm409 = vcmp.lt.s32.totalorder %v245, 111
        %v410 = vsel %vm409, %v402, %v406
        %v411 = vsel %vm409, %v404, %v408
        %v412 = vsel %vm409, %v406, %v402
        %v413 = vsel %vm409, %v408, %v404
        %v415 = vperm.slane %v231, 0
        %v416 = vperm.slane %v231, 1
        %v419 = vmul.f32 %v410, %v415
        %v420 = vmul.f32 %v412, %v416
        %v421 = vmul.f32 %v411, %v415
        %v422 = vmul.f32 %v413, %v416
        %v423 = vld [vmem:[%s1] sm:$0xff]
        %v424 = vld [vmem:[%s1 + $0x8] sm:$0xff]
        %v425 = vld [vmem:[%s1 + $0x10] sm:$0xff]
        %v426 = vld [vmem:[%s1 + $0x18] sm:$0xff]
        %v427 = vld [vmem:[#allocation2] sm:$0xff]
        %v428 = vld [vmem:[#allocation2 + $0x8] sm:$0xff]
        %430 = vset.pattern.permute.xlu0 0
        %431 = vperm.xlu0 %430, %v427
        %v432 = vpop.permute.xlu0 %431
        %435 = vset.pattern.permute.xlu0 0
        %436 = vperm.xlu0 %435, %v428
        %v437 = vpop.permute.xlu0 %436
        %vm439 = vcmask 130048
        %v441 = vsel %vm439, %v424, 0
        %v444 = vsel %vm439, %v426, 0
        %446 = vmatpush.msra.mxu0 %v399
        %447 = vmatpush.msra.mxu0 %v397
        %448 = vmatpush.msra.mxu0 %v377
        %449 = vmatpush.msra.mxu0 %v375
        %450 = vmatpush.msra.mxu0 %v355
        %451 = vmatpush.msra.mxu0 %v353
        %452 = vmatpush.msra.mxu0 %v333
        %453 = vmatpush.msra.mxu0 %v331
        %454 = vmatpush.msra.mxu0 %v324
        %455 = vmatpush.msra.mxu0 %v322
        %456 = vmatpush.msra.mxu0 %v302
        %457 = vmatpush.msra.mxu0 %v300
        %458 = vmatpush.msra.mxu0 %v280
        %459 = vmatpush.msra.mxu0 %v278
        %460 = vmatpush.msra.mxu0 %v258
        %461 = vmatpush.msra.mxu0 %v256
        %462 = vmatmul.f32.gmra.mxu0 %v423
        %v463 = vpop.f32.mrf.mxu0
        %v464 = vadd.f32 %v432, %v463
        %465 = vmatmul.f32.gmra.mxu0 %v425
        %v466 = vpop.f32.mrf.mxu0
        %v467 = vadd.f32 %v437, %v466
        %468 = vdwg.mxu0
        %469 = vmatpush.msra.mxu0 0.0
        %470 = vmatpush.msra.mxu0 0.0
        %471 = vmatpush.msra.mxu0 0.0
        %472 = vmatpush.msra.mxu0 0.0
        %473 = vmatpush.msra.mxu0 0.0
        %474 = vmatpush.msra.mxu0 0.0
        %475 = vmatpush.msra.mxu0 0.0
        %476 = vmatpush.msra.mxu0 0.0
        %477 = vmatpush.msra.mxu0 0.0
        %478 = vmatpush.msra.mxu0 0.0
        %479 = vmatpush.msra.mxu0 0.0
        %480 = vmatpush.msra.mxu0 0.0
        %481 = vmatpush.msra.mxu0 0.0
        %482 = vmatpush.msra.mxu0 0.0
        %483 = vmatpush.msra.mxu0 %v421
        %484 = vmatpush.msra.mxu0 %v419
        %485 = vmatmul.f32.gmra.mxu0 %v441
        %v486 = vpop.f32.mrf.mxu0
        %v487 = vadd.f32 %v464, %v486
        %488 = vmatmul.f32.gmra.mxu0 %v444
        %v489 = vpop.f32.mrf.mxu0
        %v490 = vadd.f32 %v467, %v489
        %491 = vdwg.mxu0
        %492 = vmatpush.msra.mxu0 %v400
        %493 = vmatpush.msra.mxu0 %v398
        %494 = vmatpush.msra.mxu0 %v378
        %495 = vmatpush.msra.mxu0 %v376
        %496 = vmatpush.msra.mxu0 %v356
        %497 = vmatpush.msra.mxu0 %v354
        %498 = vmatpush.msra.mxu0 %v334
        %499 = vmatpush.msra.mxu0 %v332
        %500 = vmatpush.msra.mxu0 %v325
        %501 = vmatpush.msra.mxu0 %v323
        %502 = vmatpush.msra.mxu0 %v303
        %503 = vmatpush.msra.mxu0 %v301
        %504 = vmatpush.msra.mxu0 %v281
        %505 = vmatpush.msra.mxu0 %v279
        %506 = vmatpush.msra.mxu0 %v259
        %507 = vmatpush.msra.mxu0 %v257
        %508 = vmatmul.f32.gmra.mxu0 %v423
        %v509 = vpop.f32.mrf.mxu0
        %v510 = vadd.f32 %v432, %v509
        %511 = vmatmul.f32.gmra.mxu0 %v425
        %v512 = vpop.f32.mrf.mxu0
        %v513 = vadd.f32 %v437, %v512
        %514 = vdwg.mxu0
        %515 = vmatpush.msra.mxu0 0.0
        %516 = vmatpush.msra.mxu0 0.0
        %517 = vmatpush.msra.mxu0 0.0
        %518 = vmatpush.msra.mxu0 0.0
        %519 = vmatpush.msra.mxu0 0.0
        %520 = vmatpush.msra.mxu0 0.0
        %521 = vmatpush.msra.mxu0 0.0
        %522 = vmatpush.msra.mxu0 0.0
        %523 = vmatpush.msra.mxu0 0.0
        %524 = vmatpush.msra.mxu0 0.0
        %525 = vmatpush.msra.mxu0 0.0
        %526 = vmatpush.msra.mxu0 0.0
        %527 = vmatpush.msra.mxu0 0.0
        %528 = vmatpush.msra.mxu0 0.0
        %529 = vmatpush.msra.mxu0 %v422
        %530 = vmatpush.msra.mxu0 %v420
        %531 = vmatmul.f32.gmra.mxu0 %v441
        %v532 = vpop.f32.mrf.mxu0
        %v533 = vadd.f32 %v510, %v532
        %534 = vmatmul.f32.gmra.mxu0 %v444
        %v535 = vpop.f32.mrf.mxu0
        %v536 = vadd.f32 %v513, %v535
        %537 = vdwg.mxu0
        %v538 = vmax.f32 %v487, 0.0
        %v539 = vmax.f32 %v533, 0.0
        %v540 = vmax.f32 %v490, 0.0
        %v541 = vmax.f32 %v536, 0.0
        %542 = vrot.lane.b32.xlu0 %v538, 17
        %v543 = vpop.permute.xlu0 %542
        %544 = vrot.lane.b32.xlu0 %v540, 17
        %v545 = vpop.permute.xlu0 %544
        %546 = vrot.lane.b32.xlu0 %v539, 17
        %v547 = vpop.permute.xlu0 %546
        %548 = vrot.lane.b32.xlu0 %v541, 17
        %v549 = vpop.permute.xlu0 %548
        %v550 = vsel %vm246, %v543, %v547
        %v551 = vsel %vm246, %v545, %v549
        %v552 = vsel %vm246, %v547, %v543
        %v553 = vsel %vm246, %v549, %v545
        %v554 = vmul.f32 %v552, %v252
        %v555 = vmul.f32 %v550, %v253
        %v556 = vmul.f32 %v553, %v252
        %v557 = vmul.f32 %v551, %v253
        %558 = vrot.lane.b32.xlu0 %v538, 16
        %v559 = vpop.permute.xlu0 %558
        %560 = vrot.lane.b32.xlu0 %v540, 16
        %v561 = vpop.permute.xlu0 %560
        %562 = vrot.lane.b32.xlu0 %v539, 16
        %v563 = vpop.permute.xlu0 %562
        %564 = vrot.lane.b32.xlu0 %v541, 16
        %v565 = vpop.permute.xlu0 %564
        %v566 = vsel %vm268, %v559, %v563
        %v567 = vsel %vm268, %v561, %v565
        %v568 = vsel %vm268, %v563, %v559
        %v569 = vsel %vm268, %v565, %v561
        %v570 = vmul.f32 %v568, %v274
        %v571 = vmul.f32 %v566, %v275
        %v572 = vmul.f32 %v569, %v274
        %v573 = vmul.f32 %v567, %v275
        %574 = vrot.lane.b32.xlu0 %v538, 15
        %v575 = vpop.permute.xlu0 %574
        %576 = vrot.lane.b32.xlu0 %v540, 15
        %v577 = vpop.permute.xlu0 %576
        %578 = vrot.lane.b32.xlu0 %v539, 15
        %v579 = vpop.permute.xlu0 %578
        %580 = vrot.lane.b32.xlu0 %v541, 15
        %v581 = vpop.permute.xlu0 %580
        %v582 = vsel %vm290, %v575, %v579
        %v583 = vsel %vm290, %v577, %v581
        %v584 = vsel %vm290, %v579, %v575
        %v585 = vsel %vm290, %v581, %v577
        %v586 = vmul.f32 %v584, %v296
        %v587 = vmul.f32 %v582, %v297
        %v588 = vmul.f32 %v585, %v296
        %v589 = vmul.f32 %v583, %v297
        %590 = vrot.lane.b32.xlu0 %v538, 1
        %v591 = vpop.permute.xlu0 %590
        %592 = vrot.lane.b32.xlu0 %v540, 1
        %v593 = vpop.permute.xlu0 %592
        %594 = vrot.lane.b32.xlu0 %v539, 1
        %v595 = vpop.permute.xlu0 %594
        %596 = vrot.lane.b32.xlu0 %v541, 1
        %v597 = vpop.permute.xlu0 %596
        %v598 = vsel %vm312, %v591, %v595
        %v599 = vsel %vm312, %v593, %v597
        %v600 = vsel %vm312, %v595, %v591
        %v601 = vsel %vm312, %v597, %v593
        %v602 = vmul.f32 %v600, %v318
        %v603 = vmul.f32 %v598, %v319
        %v604 = vmul.f32 %v601, %v318
        %v605 = vmul.f32 %v599, %v319
        %v606 = vmul.f32 %v538, %v327
        %v607 = vmul.f32 %v539, %v328
        %v608 = vmul.f32 %v540, %v327
        %v609 = vmul.f32 %v541, %v328
        %610 = vrot.lane.b32.xlu0 %v538, 127
        %v611 = vpop.permute.xlu0 %610
        %612 = vrot.lane.b32.xlu0 %v540, 127
        %v613 = vpop.permute.xlu0 %612
        %614 = vrot.lane.b32.xlu0 %v539, 127
        %v615 = vpop.permute.xlu0 %614
        %616 = vrot.lane.b32.xlu0 %v541, 127
        %v617 = vpop.permute.xlu0 %616
        %v618 = vsel %vm343, %v611, %v615
        %v619 = vsel %vm343, %v613, %v617
        %v620 = vsel %vm343, %v615, %v611
        %v621 = vsel %vm343, %v617, %v613
        %v622 = vmul.f32 %v618, %v349
        %v623 = vmul.f32 %v620, %v350
        %v624 = vmul.f32 %v619, %v349
        %v625 = vmul.f32 %v621, %v350
        %626 = vrot.lane.b32.xlu0 %v538, 113
        %v627 = vpop.permute.xlu0 %626
        %628 = vrot.lane.b32.xlu0 %v540, 113
        %v629 = vpop.permute.xlu0 %628
        %630 = vrot.lane.b32.xlu0 %v539, 113
        %v631 = vpop.permute.xlu0 %630
        %632 = vrot.lane.b32.xlu0 %v541, 113
        %v633 = vpop.permute.xlu0 %632
        %v634 = vsel %vm365, %v627, %v631
        %v635 = vsel %vm365, %v629, %v633
        %v636 = vsel %vm365, %v631, %v627
        %v637 = vsel %vm365, %v633, %v629
        %v638 = vmul.f32 %v634, %v371
        %v639 = vmul.f32 %v636, %v372
        %v640 = vmul.f32 %v635, %v371
        %v641 = vmul.f32 %v637, %v372
        %642 = vrot.lane.b32.xlu0 %v538, 112
        %v643 = vpop.permute.xlu0 %642
        %644 = vrot.lane.b32.xlu0 %v540, 112
        %v645 = vpop.permute.xlu0 %644
        %646 = vrot.lane.b32.xlu0 %v539, 112
        %v647 = vpop.permute.xlu0 %646
        %648 = vrot.lane.b32.xlu0 %v541, 112
        %v649 = vpop.permute.xlu0 %648
        %v650 = vsel %vm387, %v643, %v647
        %v651 = vsel %vm387, %v645, %v649
        %v652 = vsel %vm387, %v647, %v643
        %v653 = vsel %vm387, %v649, %v645
        %v654 = vmul.f32 %v650, %v393
        %v655 = vmul.f32 %v652, %v394
        %v656 = vmul.f32 %v651, %v393
        %v657 = vmul.f32 %v653, %v394
        %658 = vrot.lane.b32.xlu0 %v538, 111
        %v659 = vpop.permute.xlu0 %658
        %660 = vrot.lane.b32.xlu0 %v540, 111
        %v661 = vpop.permute.xlu0 %660
        %662 = vrot.lane.b32.xlu0 %v539, 111
        %v663 = vpop.permute.xlu0 %662
        %664 = vrot.lane.b32.xlu0 %v541, 111
        %v665 = vpop.permute.xlu0 %664
        %v666 = vsel %vm409, %v659, %v663
        %v667 = vsel %vm409, %v661, %v665
        %v668 = vsel %vm409, %v663, %v659
        %v669 = vsel %vm409, %v665, %v661
        %v670 = vmul.f32 %v666, %v415
        %v671 = vmul.f32 %v668, %v416
        %v672 = vmul.f32 %v667, %v415
        %v673 = vmul.f32 %v669, %v416
        %s674 = scalar_lea.vmem %s1, 32
        %v675 = vld [vmem:[%s674] sm:$0xff]
        %v676 = vld [vmem:[%s674 + $0x8] sm:$0xff]
        %v677 = vld [vmem:[%s674 + $0x10] sm:$0xff]
        %v678 = vld [vmem:[%s674 + $0x18] sm:$0xff]
        %s679 = scalar_lea.vmem [#allocation2], 16
        %v680 = vld [vmem:[%s679] sm:$0xff]
        %v681 = vld [vmem:[%s679 + $0x8] sm:$0xff]
        %683 = vset.pattern.permute.xlu0 0
        %684 = vperm.xlu0 %683, %v680
        %v685 = vpop.permute.xlu0 %684
        %688 = vset.pattern.permute.xlu0 0
        %689 = vperm.xlu0 %688, %v681
        %v690 = vpop.permute.xlu0 %689
        %v693 = vsel %vm439, %v676, 0
        %v696 = vsel %vm439, %v678, 0
        %698 = vmatpush.msra.mxu0 %v656
        %699 = vmatpush.msra.mxu0 %v654
        %700 = vmatpush.msra.mxu0 %v640
        %701 = vmatpush.msra.mxu0 %v638
        %702 = vmatpush.msra.mxu0 %v624
        %703 = vmatpush.msra.mxu0 %v622
        %704 = vmatpush.msra.mxu0 %v608
        %705 = vmatpush.msra.mxu0 %v606
        %706 = vmatpush.msra.mxu0 %v604
        %707 = vmatpush.msra.mxu0 %v602
        %708 = vmatpush.msra.mxu0 %v588
        %709 = vmatpush.msra.mxu0 %v586
        %710 = vmatpush.msra.mxu0 %v572
        %711 = vmatpush.msra.mxu0 %v570
        %712 = vmatpush.msra.mxu0 %v556
        %713 = vmatpush.msra.mxu0 %v554
        %714 = vmatmul.f32.gmra.mxu0 %v675
        %v715 = vpop.f32.mrf.mxu0
        %v716 = vadd.f32 %v685, %v715
        %717 = vmatmul.f32.gmra.mxu0 %v677
        %v718 = vpop.f32.mrf.mxu0
        %v719 = vadd.f32 %v690, %v718
        %720 = vdwg.mxu0
        %721 = vmatpush.msra.mxu0 0.0
        %722 = vmatpush.msra.mxu0 0.0
        %723 = vmatpush.msra.mxu0 0.0
        %724 = vmatpush.msra.mxu0 0.0
        %725 = vmatpush.msra.mxu0 0.0
        %726 = vmatpush.msra.mxu0 0.0
        %727 = vmatpush.msra.mxu0 0.0
        %728 = vmatpush.msra.mxu0 0.0
        %729 = vmatpush.msra.mxu0 0.0
        %730 = vmatpush.msra.mxu0 0.0
        %731 = vmatpush.msra.mxu0 0.0
        %732 = vmatpush.msra.mxu0 0.0
        %733 = vmatpush.msra.mxu0 0.0
        %734 = vmatpush.msra.mxu0 0.0
        %735 = vmatpush.msra.mxu0 %v672
        %736 = vmatpush.msra.mxu0 %v670
        %737 = vmatmul.f32.gmra.mxu0 %v693
        %v738 = vpop.f32.mrf.mxu0
        %v739 = vadd.f32 %v716, %v738
        %740 = vmatmul.f32.gmra.mxu0 %v696
        %v741 = vpop.f32.mrf.mxu0
        %v742 = vadd.f32 %v719, %v741
        %743 = vdwg.mxu0
        %744 = vmatpush.msra.mxu0 %v657
        %745 = vmatpush.msra.mxu0 %v655
        %746 = vmatpush.msra.mxu0 %v641
        %747 = vmatpush.msra.mxu0 %v639
        %748 = vmatpush.msra.mxu0 %v625
        %749 = vmatpush.msra.mxu0 %v623
        %750 = vmatpush.msra.mxu0 %v609
        %751 = vmatpush.msra.mxu0 %v607
        %752 = vmatpush.msra.mxu0 %v605
        %753 = vmatpush.msra.mxu0 %v603
        %754 = vmatpush.msra.mxu0 %v589
        %755 = vmatpush.msra.mxu0 %v587
        %756 = vmatpush.msra.mxu0 %v573
        %757 = vmatpush.msra.mxu0 %v571
        %758 = vmatpush.msra.mxu0 %v557
        %759 = vmatpush.msra.mxu0 %v555
        %760 = vmatmul.f32.gmra.mxu0 %v675
        %v761 = vpop.f32.mrf.mxu0
        %v762 = vadd.f32 %v685, %v761
        %763 = vmatmul.f32.gmra.mxu0 %v677
        %v764 = vpop.f32.mrf.mxu0
        %v765 = vadd.f32 %v690, %v764
        %766 = vdwg.mxu0
        %767 = vmatpush.msra.mxu0 0.0
        %768 = vmatpush.msra.mxu0 0.0
        %769 = vmatpush.msra.mxu0 0.0
        %770 = vmatpush.msra.mxu0 0.0
        %771 = vmatpush.msra.mxu0 0.0
        %772 = vmatpush.msra.mxu0 0.0
        %773 = vmatpush.msra.mxu0 0.0
        %774 = vmatpush.msra.mxu0 0.0
        %775 = vmatpush.msra.mxu0 0.0
        %776 = vmatpush.msra.mxu0 0.0
        %777 = vmatpush.msra.mxu0 0.0
        %778 = vmatpush.msra.mxu0 0.0
        %779 = vmatpush.msra.mxu0 0.0
        %780 = vmatpush.msra.mxu0 0.0
        %781 = vmatpush.msra.mxu0 %v673
        %782 = vmatpush.msra.mxu0 %v671
        %783 = vmatmul.f32.gmra.mxu0 %v693
        %v784 = vpop.f32.mrf.mxu0
        %v785 = vadd.f32 %v762, %v784
        %786 = vmatmul.f32.gmra.mxu0 %v696
        %v787 = vpop.f32.mrf.mxu0
        %v788 = vadd.f32 %v765, %v787
        %789 = vdwg.mxu0
        %v790 = vmax.f32 %v739, 0.0
        %v791 = vmax.f32 %v785, 0.0
        %v792 = vmax.f32 %v742, 0.0
        %v793 = vmax.f32 %v788, 0.0
        %794 = vrot.lane.b32.xlu0 %v790, 17
        %v795 = vpop.permute.xlu0 %794
        %796 = vrot.lane.b32.xlu0 %v792, 17
        %v797 = vpop.permute.xlu0 %796
        %798 = vrot.lane.b32.xlu0 %v791, 17
        %v799 = vpop.permute.xlu0 %798
        %800 = vrot.lane.b32.xlu0 %v793, 17
        %v801 = vpop.permute.xlu0 %800
        %v802 = vsel %vm246, %v795, %v799
        %v803 = vsel %vm246, %v797, %v801
        %v804 = vsel %vm246, %v799, %v795
        %v805 = vsel %vm246, %v801, %v797
        %v806 = vmul.f32 %v804, %v252
        %v807 = vmul.f32 %v802, %v253
        %v808 = vmul.f32 %v805, %v252
        %v809 = vmul.f32 %v803, %v253
        %810 = vrot.lane.b32.xlu0 %v790, 16
        %v811 = vpop.permute.xlu0 %810
        %812 = vrot.lane.b32.xlu0 %v792, 16
        %v813 = vpop.permute.xlu0 %812
        %814 = vrot.lane.b32.xlu0 %v791, 16
        %v815 = vpop.permute.xlu0 %814
        %816 = vrot.lane.b32.xlu0 %v793, 16
        %v817 = vpop.permute.xlu0 %816
        %v818 = vsel %vm268, %v811, %v815
        %v819 = vsel %vm268, %v813, %v817
        %v820 = vsel %vm268, %v815, %v811
        %v821 = vsel %vm268, %v817, %v813
        %v822 = vmul.f32 %v820, %v274
        %v823 = vmul.f32 %v818, %v275
        %v824 = vmul.f32 %v821, %v274
        %v825 = vmul.f32 %v819, %v275
        %826 = vrot.lane.b32.xlu0 %v790, 15
        %v827 = vpop.permute.xlu0 %826
        %828 = vrot.lane.b32.xlu0 %v792, 15
        %v829 = vpop.permute.xlu0 %828
        %830 = vrot.lane.b32.xlu0 %v791, 15
        %v831 = vpop.permute.xlu0 %830
        %832 = vrot.lane.b32.xlu0 %v793, 15
        %v833 = vpop.permute.xlu0 %832
        %v834 = vsel %vm290, %v827, %v831
        %v835 = vsel %vm290, %v829, %v833
        %v836 = vsel %vm290, %v831, %v827
        %v837 = vsel %vm290, %v833, %v829
        %v838 = vmul.f32 %v836, %v296
        %v839 = vmul.f32 %v834, %v297
        %v840 = vmul.f32 %v837, %v296
        %v841 = vmul.f32 %v835, %v297
        %842 = vrot.lane.b32.xlu0 %v790, 1
        %v843 = vpop.permute.xlu0 %842
        %844 = vrot.lane.b32.xlu0 %v792, 1
        %v845 = vpop.permute.xlu0 %844
        %846 = vrot.lane.b32.xlu0 %v791, 1
        %v847 = vpop.permute.xlu0 %846
        %848 = vrot.lane.b32.xlu0 %v793, 1
        %v849 = vpop.permute.xlu0 %848
        %v850 = vsel %vm312, %v843, %v847
        %v851 = vsel %vm312, %v845, %v849
        %v852 = vsel %vm312, %v847, %v843
        %v853 = vsel %vm312, %v849, %v845
        %v854 = vmul.f32 %v852, %v318
        %v855 = vmul.f32 %v850, %v319
        %v856 = vmul.f32 %v853, %v318
        %v857 = vmul.f32 %v851, %v319
        %v858 = vmul.f32 %v790, %v327
        %v859 = vmul.f32 %v791, %v328
        %v860 = vmul.f32 %v792, %v327
        %v861 = vmul.f32 %v793, %v328
        %862 = vrot.lane.b32.xlu0 %v790, 127
        %v863 = vpop.permute.xlu0 %862
        %864 = vrot.lane.b32.xlu0 %v792, 127
        %v865 = vpop.permute.xlu0 %864
        %866 = vrot.lane.b32.xlu0 %v791, 127
        %v867 = vpop.permute.xlu0 %866
        %868 = vrot.lane.b32.xlu0 %v793, 127
        %v869 = vpop.permute.xlu0 %868
        %v870 = vsel %vm343, %v863, %v867
        %v871 = vsel %vm343, %v865, %v869
        %v872 = vsel %vm343, %v867, %v863
        %v873 = vsel %vm343, %v869, %v865
        %v874 = vmul.f32 %v870, %v349
        %v875 = vmul.f32 %v872, %v350
        %v876 = vmul.f32 %v871, %v349
        %v877 = vmul.f32 %v873, %v350
        %878 = vrot.lane.b32.xlu0 %v790, 113
        %v879 = vpop.permute.xlu0 %878
        %880 = vrot.lane.b32.xlu0 %v792, 113
        %v881 = vpop.permute.xlu0 %880
        %882 = vrot.lane.b32.xlu0 %v791, 113
        %v883 = vpop.permute.xlu0 %882
        %884 = vrot.lane.b32.xlu0 %v793, 113
        %v885 = vpop.permute.xlu0 %884
        %v886 = vsel %vm365, %v879, %v883
        %v887 = vsel %vm365, %v881, %v885
        %v888 = vsel %vm365, %v883, %v879
        %v889 = vsel %vm365, %v885, %v881
        %v890 = vmul.f32 %v886, %v371
        %v891 = vmul.f32 %v888, %v372
        %v892 = vmul.f32 %v887, %v371
        %v893 = vmul.f32 %v889, %v372
        %894 = vrot.lane.b32.xlu0 %v790, 112
        %v895 = vpop.permute.xlu0 %894
        %896 = vrot.lane.b32.xlu0 %v792, 112
        %v897 = vpop.permute.xlu0 %896
        %898 = vrot.lane.b32.xlu0 %v791, 112
        %v899 = vpop.permute.xlu0 %898
        %900 = vrot.lane.b32.xlu0 %v793, 112
        %v901 = vpop.permute.xlu0 %900
        %v902 = vsel %vm387, %v895, %v899
        %v903 = vsel %vm387, %v897, %v901
        %v904 = vsel %vm387, %v899, %v895
        %v905 = vsel %vm387, %v901, %v897
        %v906 = vmul.f32 %v902, %v393
        %v907 = vmul.f32 %v904, %v394
        %v908 = vmul.f32 %v903, %v393
        %v909 = vmul.f32 %v905, %v394
        %910 = vrot.lane.b32.xlu0 %v790, 111
        %v911 = vpop.permute.xlu0 %910
        %912 = vrot.lane.b32.xlu0 %v792, 111
        %v913 = vpop.permute.xlu0 %912
        %914 = vrot.lane.b32.xlu0 %v791, 111
        %v915 = vpop.permute.xlu0 %914
        %916 = vrot.lane.b32.xlu0 %v793, 111
        %v917 = vpop.permute.xlu0 %916
        %v918 = vsel %vm409, %v911, %v915
        %v919 = vsel %vm409, %v913, %v917
        %v920 = vsel %vm409, %v915, %v911
        %v921 = vsel %vm409, %v917, %v913
        %v922 = vmul.f32 %v918, %v415
        %v923 = vmul.f32 %v920, %v416
        %v924 = vmul.f32 %v919, %v415
        %v925 = vmul.f32 %v921, %v416
        %s926 = scalar_lea.vmem %s1, 64
        %v927 = vld [vmem:[%s926] sm:$0xff]
        %v928 = vld [vmem:[%s926 + $0x8] sm:$0xff]
        %v929 = vld [vmem:[%s926 + $0x10] sm:$0xff]
        %v930 = vld [vmem:[%s926 + $0x18] sm:$0xff]
        %s931 = scalar_lea.vmem [#allocation2], 32
        %v932 = vld [vmem:[%s931] sm:$0xff]
        %v933 = vld [vmem:[%s931 + $0x8] sm:$0xff]
        %935 = vset.pattern.permute.xlu0 0
        %936 = vperm.xlu0 %935, %v932
        %v937 = vpop.permute.xlu0 %936
        %940 = vset.pattern.permute.xlu0 0
        %941 = vperm.xlu0 %940, %v933
        %v942 = vpop.permute.xlu0 %941
        %v945 = vsel %vm439, %v928, 0
        %v948 = vsel %vm439, %v930, 0
        %950 = vmatpush.msra.mxu0 %v908
        %951 = vmatpush.msra.mxu0 %v906
        %952 = vmatpush.msra.mxu0 %v892
        %953 = vmatpush.msra.mxu0 %v890
        %954 = vmatpush.msra.mxu0 %v876
        %955 = vmatpush.msra.mxu0 %v874
        %956 = vmatpush.msra.mxu0 %v860
        %957 = vmatpush.msra.mxu0 %v858
        %958 = vmatpush.msra.mxu0 %v856
        %959 = vmatpush.msra.mxu0 %v854
        %960 = vmatpush.msra.mxu0 %v840
        %961 = vmatpush.msra.mxu0 %v838
        %962 = vmatpush.msra.mxu0 %v824
        %963 = vmatpush.msra.mxu0 %v822
        %964 = vmatpush.msra.mxu0 %v808
        %965 = vmatpush.msra.mxu0 %v806
        %966 = vmatmul.f32.gmra.mxu0 %v927
        %v967 = vpop.f32.mrf.mxu0
        %v968 = vadd.f32 %v937, %v967
        %969 = vmatmul.f32.gmra.mxu0 %v929
        %v970 = vpop.f32.mrf.mxu0
        %v971 = vadd.f32 %v942, %v970
        %972 = vdwg.mxu0
        %973 = vmatpush.msra.mxu0 0.0
        %974 = vmatpush.msra.mxu0 0.0
        %975 = vmatpush.msra.mxu0 0.0
        %976 = vmatpush.msra.mxu0 0.0
        %977 = vmatpush.msra.mxu0 0.0
        %978 = vmatpush.msra.mxu0 0.0
        %979 = vmatpush.msra.mxu0 0.0
        %980 = vmatpush.msra.mxu0 0.0
        %981 = vmatpush.msra.mxu0 0.0
        %982 = vmatpush.msra.mxu0 0.0
        %983 = vmatpush.msra.mxu0 0.0
        %984 = vmatpush.msra.mxu0 0.0
        %985 = vmatpush.msra.mxu0 0.0
        %986 = vmatpush.msra.mxu0 0.0
        %987 = vmatpush.msra.mxu0 %v924
        %988 = vmatpush.msra.mxu0 %v922
        %989 = vmatmul.f32.gmra.mxu0 %v945
        %v990 = vpop.f32.mrf.mxu0
        %v991 = vadd.f32 %v968, %v990
        %992 = vmatmul.f32.gmra.mxu0 %v948
        %v993 = vpop.f32.mrf.mxu0
        %v994 = vadd.f32 %v971, %v993
        %995 = vdwg.mxu0
        %996 = vmatpush.msra.mxu0 %v909
        %997 = vmatpush.msra.mxu0 %v907
        %998 = vmatpush.msra.mxu0 %v893
        %999 = vmatpush.msra.mxu0 %v891
        %1000 = vmatpush.msra.mxu0 %v877
        %1001 = vmatpush.msra.mxu0 %v875
        %1002 = vmatpush.msra.mxu0 %v861
        %1003 = vmatpush.msra.mxu0 %v859
        %1004 = vmatpush.msra.mxu0 %v857
        %1005 = vmatpush.msra.mxu0 %v855
        %1006 = vmatpush.msra.mxu0 %v841
        %1007 = vmatpush.msra.mxu0 %v839
        %1008 = vmatpush.msra.mxu0 %v825
        %1009 = vmatpush.msra.mxu0 %v823
        %1010 = vmatpush.msra.mxu0 %v809
        %1011 = vmatpush.msra.mxu0 %v807
        %1012 = vmatmul.f32.gmra.mxu0 %v927
        %v1013 = vpop.f32.mrf.mxu0
        %v1014 = vadd.f32 %v937, %v1013
        %1015 = vmatmul.f32.gmra.mxu0 %v929
        %v1016 = vpop.f32.mrf.mxu0
        %v1017 = vadd.f32 %v942, %v1016
        %1018 = vdwg.mxu0
        %1019 = vmatpush.msra.mxu0 0.0
        %1020 = vmatpush.msra.mxu0 0.0
        %1021 = vmatpush.msra.mxu0 0.0
        %1022 = vmatpush.msra.mxu0 0.0
        %1023 = vmatpush.msra.mxu0 0.0
        %1024 = vmatpush.msra.mxu0 0.0
        %1025 = vmatpush.msra.mxu0 0.0
        %1026 = vmatpush.msra.mxu0 0.0
        %1027 = vmatpush.msra.mxu0 0.0
        %1028 = vmatpush.msra.mxu0 0.0
        %1029 = vmatpush.msra.mxu0 0.0
        %1030 = vmatpush.msra.mxu0 0.0
        %1031 = vmatpush.msra.mxu0 0.0
        %1032 = vmatpush.msra.mxu0 0.0
        %1033 = vmatpush.msra.mxu0 %v925
        %1034 = vmatpush.msra.mxu0 %v923
        %1035 = vmatmul.f32.gmra.mxu0 %v945
        %v1036 = vpop.f32.mrf.mxu0
        %v1037 = vadd.f32 %v1014, %v1036
        %1038 = vmatmul.f32.gmra.mxu0 %v948
        %v1039 = vpop.f32.mrf.mxu0
        %v1040 = vadd.f32 %v1017, %v1039
        %1041 = vdwg.mxu0
        %v1042 = vmax.f32 %v991, 0.0
        %v1043 = vmax.f32 %v1037, 0.0
        %v1044 = vmax.f32 %v994, 0.0
        %v1045 = vmax.f32 %v1040, 0.0
        %1046 = vrot.lane.b32.xlu0 %v1042, 17
        %v1047 = vpop.permute.xlu0 %1046
        %1048 = vrot.lane.b32.xlu0 %v1044, 17
        %v1049 = vpop.permute.xlu0 %1048
        %1050 = vrot.lane.b32.xlu0 %v1043, 17
        %v1051 = vpop.permute.xlu0 %1050
        %1052 = vrot.lane.b32.xlu0 %v1045, 17
        %v1053 = vpop.permute.xlu0 %1052
        %v1054 = vsel %vm246, %v1047, %v1051
        %v1055 = vsel %vm246, %v1049, %v1053
        %v1056 = vsel %vm246, %v1051, %v1047
        %v1057 = vsel %vm246, %v1053, %v1049
        %v1058 = vmul.f32 %v1056, %v252
        %v1059 = vmul.f32 %v1054, %v253
        %v1060 = vmul.f32 %v1057, %v252
        %v1061 = vmul.f32 %v1055, %v253
        %1062 = vrot.lane.b32.xlu0 %v1042, 16
        %v1063 = vpop.permute.xlu0 %1062
        %1064 = vrot.lane.b32.xlu0 %v1044, 16
        %v1065 = vpop.permute.xlu0 %1064
        %1066 = vrot.lane.b32.xlu0 %v1043, 16
        %v1067 = vpop.permute.xlu0 %1066
        %1068 = vrot.lane.b32.xlu0 %v1045, 16
        %v1069 = vpop.permute.xlu0 %1068
        %v1070 = vsel %vm268, %v1063, %v1067
        %v1071 = vsel %vm268, %v1065, %v1069
        %v1072 = vsel %vm268, %v1067, %v1063
        %v1073 = vsel %vm268, %v1069, %v1065
        %v1074 = vmul.f32 %v1072, %v274
        %v1075 = vmul.f32 %v1070, %v275
        %v1076 = vmul.f32 %v1073, %v274
        %v1077 = vmul.f32 %v1071, %v275
        %1078 = vrot.lane.b32.xlu0 %v1042, 15
        %v1079 = vpop.permute.xlu0 %1078
        %1080 = vrot.lane.b32.xlu0 %v1044, 15
        %v1081 = vpop.permute.xlu0 %1080
        %1082 = vrot.lane.b32.xlu0 %v1043, 15
        %v1083 = vpop.permute.xlu0 %1082
        %1084 = vrot.lane.b32.xlu0 %v1045, 15
        %v1085 = vpop.permute.xlu0 %1084
        %v1086 = vsel %vm290, %v1079, %v1083
        %v1087 = vsel %vm290, %v1081, %v1085
        %v1088 = vsel %vm290, %v1083, %v1079
        %v1089 = vsel %vm290, %v1085, %v1081
        %v1090 = vmul.f32 %v1088, %v296
        %v1091 = vmul.f32 %v1086, %v297
        %v1092 = vmul.f32 %v1089, %v296
        %v1093 = vmul.f32 %v1087, %v297
        %1094 = vrot.lane.b32.xlu0 %v1042, 1
        %v1095 = vpop.permute.xlu0 %1094
        %1096 = vrot.lane.b32.xlu0 %v1044, 1
        %v1097 = vpop.permute.xlu0 %1096
        %1098 = vrot.lane.b32.xlu0 %v1043, 1
        %v1099 = vpop.permute.xlu0 %1098
        %1100 = vrot.lane.b32.xlu0 %v1045, 1
        %v1101 = vpop.permute.xlu0 %1100
        %v1102 = vsel %vm312, %v1095, %v1099
        %v1103 = vsel %vm312, %v1097, %v1101
        %v1104 = vsel %vm312, %v1099, %v1095
        %v1105 = vsel %vm312, %v1101, %v1097
        %v1106 = vmul.f32 %v1104, %v318
        %v1107 = vmul.f32 %v1102, %v319
        %v1108 = vmul.f32 %v1105, %v318
        %v1109 = vmul.f32 %v1103, %v319
        %v1110 = vmul.f32 %v1042, %v327
        %v1111 = vmul.f32 %v1043, %v328
        %v1112 = vmul.f32 %v1044, %v327
        %v1113 = vmul.f32 %v1045, %v328
        %1114 = vrot.lane.b32.xlu0 %v1042, 127
        %v1115 = vpop.permute.xlu0 %1114
        %1116 = vrot.lane.b32.xlu0 %v1044, 127
        %v1117 = vpop.permute.xlu0 %1116
        %1118 = vrot.lane.b32.xlu0 %v1043, 127
        %v1119 = vpop.permute.xlu0 %1118
        %1120 = vrot.lane.b32.xlu0 %v1045, 127
        %v1121 = vpop.permute.xlu0 %1120
        %v1122 = vsel %vm343, %v1115, %v1119
        %v1123 = vsel %vm343, %v1117, %v1121
        %v1124 = vsel %vm343, %v1119, %v1115
        %v1125 = vsel %vm343, %v1121, %v1117
        %v1126 = vmul.f32 %v1122, %v349
        %v1127 = vmul.f32 %v1124, %v350
        %v1128 = vmul.f32 %v1123, %v349
        %v1129 = vmul.f32 %v1125, %v350
        %1130 = vrot.lane.b32.xlu0 %v1042, 113
        %v1131 = vpop.permute.xlu0 %1130
        %1132 = vrot.lane.b32.xlu0 %v1044, 113
        %v1133 = vpop.permute.xlu0 %1132
        %1134 = vrot.lane.b32.xlu0 %v1043, 113
        %v1135 = vpop.permute.xlu0 %1134
        %1136 = vrot.lane.b32.xlu0 %v1045, 113
        %v1137 = vpop.permute.xlu0 %1136
        %v1138 = vsel %vm365, %v1131, %v1135
        %v1139 = vsel %vm365, %v1133, %v1137
        %v1140 = vsel %vm365, %v1135, %v1131
        %v1141 = vsel %vm365, %v1137, %v1133
        %v1142 = vmul.f32 %v1138, %v371
        %v1143 = vmul.f32 %v1140, %v372
        %v1144 = vmul.f32 %v1139, %v371
        %v1145 = vmul.f32 %v1141, %v372
        %1146 = vrot.lane.b32.xlu0 %v1042, 112
        %v1147 = vpop.permute.xlu0 %1146
        %1148 = vrot.lane.b32.xlu0 %v1044, 112
        %v1149 = vpop.permute.xlu0 %1148
        %1150 = vrot.lane.b32.xlu0 %v1043, 112
        %v1151 = vpop.permute.xlu0 %1150
        %1152 = vrot.lane.b32.xlu0 %v1045, 112
        %v1153 = vpop.permute.xlu0 %1152
        %v1154 = vsel %vm387, %v1147, %v1151
        %v1155 = vsel %vm387, %v1149, %v1153
        %v1156 = vsel %vm387, %v1151, %v1147
        %v1157 = vsel %vm387, %v1153, %v1149
        %v1158 = vmul.f32 %v1154, %v393
        %v1159 = vmul.f32 %v1156, %v394
        %v1160 = vmul.f32 %v1155, %v393
        %v1161 = vmul.f32 %v1157, %v394
        %1162 = vrot.lane.b32.xlu0 %v1042, 111
        %v1163 = vpop.permute.xlu0 %1162
        %1164 = vrot.lane.b32.xlu0 %v1044, 111
        %v1165 = vpop.permute.xlu0 %1164
        %1166 = vrot.lane.b32.xlu0 %v1043, 111
        %v1167 = vpop.permute.xlu0 %1166
        %1168 = vrot.lane.b32.xlu0 %v1045, 111
        %v1169 = vpop.permute.xlu0 %1168
        %v1170 = vsel %vm409, %v1163, %v1167
        %v1171 = vsel %vm409, %v1165, %v1169
        %v1172 = vsel %vm409, %v1167, %v1163
        %v1173 = vsel %vm409, %v1169, %v1165
        %v1174 = vmul.f32 %v1170, %v415
        %v1175 = vmul.f32 %v1172, %v416
        %v1176 = vmul.f32 %v1171, %v415
        %v1177 = vmul.f32 %v1173, %v416
        %s1178 = scalar_lea.vmem %s1, 96
        %v1179 = vld [vmem:[%s1178] sm:$0xff]
        %v1180 = vld [vmem:[%s1178 + $0x8] sm:$0xff]
        %v1181 = vld [vmem:[%s1178 + $0x10] sm:$0xff]
        %v1182 = vld [vmem:[%s1178 + $0x18] sm:$0xff]
        %s1183 = scalar_lea.vmem [#allocation2], 48
        %v1184 = vld [vmem:[%s1183] sm:$0xff]
        %v1185 = vld [vmem:[%s1183 + $0x8] sm:$0xff]
        %1187 = vset.pattern.permute.xlu0 0
        %1188 = vperm.xlu0 %1187, %v1184
        %v1189 = vpop.permute.xlu0 %1188
        %1192 = vset.pattern.permute.xlu0 0
        %1193 = vperm.xlu0 %1192, %v1185
        %v1194 = vpop.permute.xlu0 %1193
        %v1197 = vsel %vm439, %v1180, 0
        %v1200 = vsel %vm439, %v1182, 0
        %1202 = vmatpush.msra.mxu0 %v1160
        %1203 = vmatpush.msra.mxu0 %v1158
        %1204 = vmatpush.msra.mxu0 %v1144
        %1205 = vmatpush.msra.mxu0 %v1142
        %1206 = vmatpush.msra.mxu0 %v1128
        %1207 = vmatpush.msra.mxu0 %v1126
        %1208 = vmatpush.msra.mxu0 %v1112
        %1209 = vmatpush.msra.mxu0 %v1110
        %1210 = vmatpush.msra.mxu0 %v1108
        %1211 = vmatpush.msra.mxu0 %v1106
        %1212 = vmatpush.msra.mxu0 %v1092
        %1213 = vmatpush.msra.mxu0 %v1090
        %1214 = vmatpush.msra.mxu0 %v1076
        %1215 = vmatpush.msra.mxu0 %v1074
        %1216 = vmatpush.msra.mxu0 %v1060
        %1217 = vmatpush.msra.mxu0 %v1058
        %1218 = vmatmul.f32.gmra.mxu0 %v1179
        %v1219 = vpop.f32.mrf.mxu0
        %v1220 = vadd.f32 %v1189, %v1219
        %1221 = vmatmul.f32.gmra.mxu0 %v1181
        %v1222 = vpop.f32.mrf.mxu0
        %v1223 = vadd.f32 %v1194, %v1222
        %1224 = vdwg.mxu0
        %1225 = vmatpush.msra.mxu0 0.0
        %1226 = vmatpush.msra.mxu0 0.0
        %1227 = vmatpush.msra.mxu0 0.0
        %1228 = vmatpush.msra.mxu0 0.0
        %1229 = vmatpush.msra.mxu0 0.0
        %1230 = vmatpush.msra.mxu0 0.0
        %1231 = vmatpush.msra.mxu0 0.0
        %1232 = vmatpush.msra.mxu0 0.0
        %1233 = vmatpush.msra.mxu0 0.0
        %1234 = vmatpush.msra.mxu0 0.0
        %1235 = vmatpush.msra.mxu0 0.0
        %1236 = vmatpush.msra.mxu0 0.0
        %1237 = vmatpush.msra.mxu0 0.0
        %1238 = vmatpush.msra.mxu0 0.0
        %1239 = vmatpush.msra.mxu0 %v1176
        %1240 = vmatpush.msra.mxu0 %v1174
        %1241 = vmatmul.f32.gmra.mxu0 %v1197
        %v1242 = vpop.f32.mrf.mxu0
        %v1243 = vadd.f32 %v1220, %v1242
        %1244 = vmatmul.f32.gmra.mxu0 %v1200
        %v1245 = vpop.f32.mrf.mxu0
        %v1246 = vadd.f32 %v1223, %v1245
        %1247 = vdwg.mxu0
        %1248 = vmatpush.msra.mxu0 %v1161
        %1249 = vmatpush.msra.mxu0 %v1159
        %1250 = vmatpush.msra.mxu0 %v1145
        %1251 = vmatpush.msra.mxu0 %v1143
        %1252 = vmatpush.msra.mxu0 %v1129
        %1253 = vmatpush.msra.mxu0 %v1127
        %1254 = vmatpush.msra.mxu0 %v1113
        %1255 = vmatpush.msra.mxu0 %v1111
        %1256 = vmatpush.msra.mxu0 %v1109
        %1257 = vmatpush.msra.mxu0 %v1107
        %1258 = vmatpush.msra.mxu0 %v1093
        %1259 = vmatpush.msra.mxu0 %v1091
        %1260 = vmatpush.msra.mxu0 %v1077
        %1261 = vmatpush.msra.mxu0 %v1075
        %1262 = vmatpush.msra.mxu0 %v1061
        %1263 = vmatpush.msra.mxu0 %v1059
        %1264 = vmatmul.f32.gmra.mxu0 %v1179
        %v1265 = vpop.f32.mrf.mxu0
        %v1266 = vadd.f32 %v1189, %v1265
        %1267 = vmatmul.f32.gmra.mxu0 %v1181
        %v1268 = vpop.f32.mrf.mxu0
        %v1269 = vadd.f32 %v1194, %v1268
        %1270 = vdwg.mxu0
        %1271 = vmatpush.msra.mxu0 0.0
        %1272 = vmatpush.msra.mxu0 0.0
        %1273 = vmatpush.msra.mxu0 0.0
        %1274 = vmatpush.msra.mxu0 0.0
        %1275 = vmatpush.msra.mxu0 0.0
        %1276 = vmatpush.msra.mxu0 0.0
        %1277 = vmatpush.msra.mxu0 0.0
        %1278 = vmatpush.msra.mxu0 0.0
        %1279 = vmatpush.msra.mxu0 0.0
        %1280 = vmatpush.msra.mxu0 0.0
        %1281 = vmatpush.msra.mxu0 0.0
        %1282 = vmatpush.msra.mxu0 0.0
        %1283 = vmatpush.msra.mxu0 0.0
        %1284 = vmatpush.msra.mxu0 0.0
        %1285 = vmatpush.msra.mxu0 %v1177
        %1286 = vmatpush.msra.mxu0 %v1175
        %1287 = vmatmul.f32.gmra.mxu0 %v1197
        %v1288 = vpop.f32.mrf.mxu0
        %v1289 = vadd.f32 %v1266, %v1288
        %1290 = vmatmul.f32.gmra.mxu0 %v1200
        %v1291 = vpop.f32.mrf.mxu0
        %v1292 = vadd.f32 %v1269, %v1291
        %1293 = vdwg.mxu0
        %v1294 = vmax.f32 %v1243, 0.0
        %v1295 = vmax.f32 %v1289, 0.0
        %v1296 = vmax.f32 %v1246, 0.0
        %v1297 = vmax.f32 %v1292, 0.0
        %1298 = vrot.lane.b32.xlu0 %v1294, 17
        %v1299 = vpop.permute.xlu0 %1298
        %1300 = vrot.lane.b32.xlu0 %v1296, 17
        %v1301 = vpop.permute.xlu0 %1300
        %1302 = vrot.lane.b32.xlu0 %v1295, 17
        %v1303 = vpop.permute.xlu0 %1302
        %1304 = vrot.lane.b32.xlu0 %v1297, 17
        %v1305 = vpop.permute.xlu0 %1304
        %v1306 = vsel %vm246, %v1299, %v1303
        %v1307 = vsel %vm246, %v1301, %v1305
        %v1308 = vsel %vm246, %v1303, %v1299
        %v1309 = vsel %vm246, %v1305, %v1301
        %v1310 = vmul.f32 %v1308, %v252
        %v1311 = vmul.f32 %v1306, %v253
        %v1312 = vmul.f32 %v1309, %v252
        %v1313 = vmul.f32 %v1307, %v253
        %1314 = vrot.lane.b32.xlu0 %v1294, 16
        %v1315 = vpop.permute.xlu0 %1314
        %1316 = vrot.lane.b32.xlu0 %v1296, 16
        %v1317 = vpop.permute.xlu0 %1316
        %1318 = vrot.lane.b32.xlu0 %v1295, 16
        %v1319 = vpop.permute.xlu0 %1318
        %1320 = vrot.lane.b32.xlu0 %v1297, 16
        %v1321 = vpop.permute.xlu0 %1320
        %v1322 = vsel %vm268, %v1315, %v1319
        %v1323 = vsel %vm268, %v1317, %v1321
        %v1324 = vsel %vm268, %v1319, %v1315
        %v1325 = vsel %vm268, %v1321, %v1317
        %v1326 = vmul.f32 %v1324, %v274
        %v1327 = vmul.f32 %v1322, %v275
        %v1328 = vmul.f32 %v1325, %v274
        %v1329 = vmul.f32 %v1323, %v275
        %1330 = vrot.lane.b32.xlu0 %v1294, 15
        %v1331 = vpop.permute.xlu0 %1330
        %1332 = vrot.lane.b32.xlu0 %v1296, 15
        %v1333 = vpop.permute.xlu0 %1332
        %1334 = vrot.lane.b32.xlu0 %v1295, 15
        %v1335 = vpop.permute.xlu0 %1334
        %1336 = vrot.lane.b32.xlu0 %v1297, 15
        %v1337 = vpop.permute.xlu0 %1336
        %v1338 = vsel %vm290, %v1331, %v1335
        %v1339 = vsel %vm290, %v1333, %v1337
        %v1340 = vsel %vm290, %v1335, %v1331
        %v1341 = vsel %vm290, %v1337, %v1333
        %v1342 = vmul.f32 %v1340, %v296
        %v1343 = vmul.f32 %v1338, %v297
        %v1344 = vmul.f32 %v1341, %v296
        %v1345 = vmul.f32 %v1339, %v297
        %1346 = vrot.lane.b32.xlu0 %v1294, 1
        %v1347 = vpop.permute.xlu0 %1346
        %1348 = vrot.lane.b32.xlu0 %v1296, 1
        %v1349 = vpop.permute.xlu0 %1348
        %1350 = vrot.lane.b32.xlu0 %v1295, 1
        %v1351 = vpop.permute.xlu0 %1350
        %1352 = vrot.lane.b32.xlu0 %v1297, 1
        %v1353 = vpop.permute.xlu0 %1352
        %v1354 = vsel %vm312, %v1347, %v1351
        %v1355 = vsel %vm312, %v1349, %v1353
        %v1356 = vsel %vm312, %v1351, %v1347
        %v1357 = vsel %vm312, %v1353, %v1349
        %v1358 = vmul.f32 %v1356, %v318
        %v1359 = vmul.f32 %v1354, %v319
        %v1360 = vmul.f32 %v1357, %v318
        %v1361 = vmul.f32 %v1355, %v319
        %v1362 = vmul.f32 %v1294, %v327
        %v1363 = vmul.f32 %v1295, %v328
        %v1364 = vmul.f32 %v1296, %v327
        %v1365 = vmul.f32 %v1297, %v328
        %1366 = vrot.lane.b32.xlu0 %v1294, 127
        %v1367 = vpop.permute.xlu0 %1366
        %1368 = vrot.lane.b32.xlu0 %v1296, 127
        %v1369 = vpop.permute.xlu0 %1368
        %1370 = vrot.lane.b32.xlu0 %v1295, 127
        %v1371 = vpop.permute.xlu0 %1370
        %1372 = vrot.lane.b32.xlu0 %v1297, 127
        %v1373 = vpop.permute.xlu0 %1372
        %v1374 = vsel %vm343, %v1367, %v1371
        %v1375 = vsel %vm343, %v1369, %v1373
        %v1376 = vsel %vm343, %v1371, %v1367
        %v1377 = vsel %vm343, %v1373, %v1369
        %v1378 = vmul.f32 %v1374, %v349
        %v1379 = vmul.f32 %v1376, %v350
        %v1380 = vmul.f32 %v1375, %v349
        %v1381 = vmul.f32 %v1377, %v350
        %1382 = vrot.lane.b32.xlu0 %v1294, 113
        %v1383 = vpop.permute.xlu0 %1382
        %1384 = vrot.lane.b32.xlu0 %v1296, 113
        %v1385 = vpop.permute.xlu0 %1384
        %1386 = vrot.lane.b32.xlu0 %v1295, 113
        %v1387 = vpop.permute.xlu0 %1386
        %1388 = vrot.lane.b32.xlu0 %v1297, 113
        %v1389 = vpop.permute.xlu0 %1388
        %v1390 = vsel %vm365, %v1383, %v1387
        %v1391 = vsel %vm365, %v1385, %v1389
        %v1392 = vsel %vm365, %v1387, %v1383
        %v1393 = vsel %vm365, %v1389, %v1385
        %v1394 = vmul.f32 %v1390, %v371
        %v1395 = vmul.f32 %v1392, %v372
        %v1396 = vmul.f32 %v1391, %v371
        %v1397 = vmul.f32 %v1393, %v372
        %1398 = vrot.lane.b32.xlu0 %v1294, 112
        %v1399 = vpop.permute.xlu0 %1398
        %1400 = vrot.lane.b32.xlu0 %v1296, 112
        %v1401 = vpop.permute.xlu0 %1400
        %1402 = vrot.lane.b32.xlu0 %v1295, 112
        %v1403 = vpop.permute.xlu0 %1402
        %1404 = vrot.lane.b32.xlu0 %v1297, 112
        %v1405 = vpop.permute.xlu0 %1404
        %v1406 = vsel %vm387, %v1399, %v1403
        %v1407 = vsel %vm387, %v1401, %v1405
        %v1408 = vsel %vm387, %v1403, %v1399
        %v1409 = vsel %vm387, %v1405, %v1401
        %v1410 = vmul.f32 %v1406, %v393
        %v1411 = vmul.f32 %v1408, %v394
        %v1412 = vmul.f32 %v1407, %v393
        %v1413 = vmul.f32 %v1409, %v394
        %1414 = vrot.lane.b32.xlu0 %v1294, 111
        %v1415 = vpop.permute.xlu0 %1414
        %1416 = vrot.lane.b32.xlu0 %v1296, 111
        %v1417 = vpop.permute.xlu0 %1416
        %1418 = vrot.lane.b32.xlu0 %v1295, 111
        %v1419 = vpop.permute.xlu0 %1418
        %1420 = vrot.lane.b32.xlu0 %v1297, 111
        %v1421 = vpop.permute.xlu0 %1420
        %v1422 = vsel %vm409, %v1415, %v1419
        %v1423 = vsel %vm409, %v1417, %v1421
        %v1424 = vsel %vm409, %v1419, %v1415
        %v1425 = vsel %vm409, %v1421, %v1417
        %v1426 = vmul.f32 %v1422, %v415
        %v1427 = vmul.f32 %v1424, %v416
        %v1428 = vmul.f32 %v1423, %v415
        %v1429 = vmul.f32 %v1425, %v416
        %s1430 = scalar_lea.vmem %s1, 128
        %v1431 = vld [vmem:[%s1430] sm:$0xff]
        %v1432 = vld [vmem:[%s1430 + $0x8] sm:$0xff]
        %v1433 = vld [vmem:[%s1430 + $0x10] sm:$0xff]
        %v1434 = vld [vmem:[%s1430 + $0x18] sm:$0xff]
        %s1435 = scalar_lea.vmem [#allocation2], 64
        %v1436 = vld [vmem:[%s1435] sm:$0xff]
        %v1437 = vld [vmem:[%s1435 + $0x8] sm:$0xff]
        %1439 = vset.pattern.permute.xlu0 0
        %1440 = vperm.xlu0 %1439, %v1436
        %v1441 = vpop.permute.xlu0 %1440
        %1444 = vset.pattern.permute.xlu0 0
        %1445 = vperm.xlu0 %1444, %v1437
        %v1446 = vpop.permute.xlu0 %1445
        %v1448 = vsel %vm439, %v1432, 0
        %v1451 = vsel %vm439, %v1434, 0
        %1453 = vmatpush.msra.mxu0 %v1412
        %1454 = vmatpush.msra.mxu0 %v1410
        %1455 = vmatpush.msra.mxu0 %v1396
        %1456 = vmatpush.msra.mxu0 %v1394
        %1457 = vmatpush.msra.mxu0 %v1380
        %1458 = vmatpush.msra.mxu0 %v1378
        %1459 = vmatpush.msra.mxu0 %v1364
        %1460 = vmatpush.msra.mxu0 %v1362
        %1461 = vmatpush.msra.mxu0 %v1360
        %1462 = vmatpush.msra.mxu0 %v1358
        %1463 = vmatpush.msra.mxu0 %v1344
        %1464 = vmatpush.msra.mxu0 %v1342
        %1465 = vmatpush.msra.mxu0 %v1328
        %1466 = vmatpush.msra.mxu0 %v1326
        %1467 = vmatpush.msra.mxu0 %v1312
        %1468 = vmatpush.msra.mxu0 %v1310
        %1469 = vmatmul.f32.gmra.mxu0 %v1431
        %v1470 = vpop.f32.mrf.mxu0
        %v1471 = vadd.f32 %v1441, %v1470
        %1472 = vmatmul.f32.gmra.mxu0 %v1433
        %v1473 = vpop.f32.mrf.mxu0
        %1474 = vdwg.mxu0
        %1475 = vmatpush.msra.mxu0 0.0
        %1476 = vmatpush.msra.mxu0 0.0
        %1477 = vmatpush.msra.mxu0 0.0
        %1478 = vmatpush.msra.mxu0 0.0
        %1479 = vmatpush.msra.mxu0 0.0
        %1480 = vmatpush.msra.mxu0 0.0
        %1481 = vmatpush.msra.mxu0 0.0
        %1482 = vmatpush.msra.mxu0 0.0
        %1483 = vmatpush.msra.mxu0 0.0
        %1484 = vmatpush.msra.mxu0 0.0
        %1485 = vmatpush.msra.mxu0 0.0
        %1486 = vmatpush.msra.mxu0 0.0
        %1487 = vmatpush.msra.mxu0 0.0
        %1488 = vmatpush.msra.mxu0 0.0
        %1489 = vmatpush.msra.mxu0 %v1428
        %1490 = vmatpush.msra.mxu0 %v1426
        %1491 = vmatmul.f32.gmra.mxu0 %v1448
        %v1492 = vpop.f32.mrf.mxu0
        %v1493 = vadd.f32 %v1471, %v1492
        %1494 = vmatmul.f32.gmra.mxu0 %v1451
        %v1495 = vpop.f32.mrf.mxu0
        %1496 = vdwg.mxu0
        %1497 = vmatpush.msra.mxu0 %v1413
        %1498 = vmatpush.msra.mxu0 %v1411
        %1499 = vmatpush.msra.mxu0 %v1397
        %1500 = vmatpush.msra.mxu0 %v1395
        %1501 = vmatpush.msra.mxu0 %v1381
        %1502 = vmatpush.msra.mxu0 %v1379
        %1503 = vmatpush.msra.mxu0 %v1365
        %1504 = vmatpush.msra.mxu0 %v1363
        %1505 = vmatpush.msra.mxu0 %v1361
        %1506 = vmatpush.msra.mxu0 %v1359
        %1507 = vmatpush.msra.mxu0 %v1345
        %1508 = vmatpush.msra.mxu0 %v1343
        %1509 = vmatpush.msra.mxu0 %v1329
        %1510 = vmatpush.msra.mxu0 %v1327
        %1511 = vmatpush.msra.mxu0 %v1313
        %1512 = vmatpush.msra.mxu0 %v1311
        %1513 = vmatmul.f32.gmra.mxu0 %v1431
        %v1514 = vpop.f32.mrf.mxu0
        %v1515 = vadd.f32 %v1441, %v1514
        %1516 = vmatmul.f32.gmra.mxu0 %v1433
        %v1517 = vpop.f32.mrf.mxu0
        %1518 = vdwg.mxu0
        %1519 = vmatpush.msra.mxu0 0.0
        %1520 = vmatpush.msra.mxu0 0.0
        %1521 = vmatpush.msra.mxu0 0.0
        %1522 = vmatpush.msra.mxu0 0.0
        %1523 = vmatpush.msra.mxu0 0.0
        %1524 = vmatpush.msra.mxu0 0.0
        %1525 = vmatpush.msra.mxu0 0.0
        %1526 = vmatpush.msra.mxu0 0.0
        %1527 = vmatpush.msra.mxu0 0.0
        %1528 = vmatpush.msra.mxu0 0.0
        %1529 = vmatpush.msra.mxu0 0.0
        %1530 = vmatpush.msra.mxu0 0.0
        %1531 = vmatpush.msra.mxu0 0.0
        %1532 = vmatpush.msra.mxu0 0.0
        %1533 = vmatpush.msra.mxu0 %v1429
        %1534 = vmatpush.msra.mxu0 %v1427
        %1535 = vmatmul.f32.gmra.mxu0 %v1448
        %v1536 = vpop.f32.mrf.mxu0
        %v1537 = vadd.f32 %v1515, %v1536
        %1538 = vmatmul.f32.gmra.mxu0 %v1451
        %v1539 = vpop.f32.mrf.mxu0
        %1540 = vdwg.mxu0
        %v1541 = vmax.f32 %v1493, 0.0
        %v1542 = vmax.f32 %v1537, 0.0
        %1543 = vst [vmem:[%s214] sm:$0xff] %v1541
        %1544 = vst [vmem:[%s214 + $0x8] sm:$0xff] %v1542
        %p1545 = scmp.lt.s32.totalorder %s16, 1
        %s1546 = scalar_select %p1545, %s16, 1
        %s1547 = smul.addr %s1546, 2
        %s1548 = smul.addr %s1547, 8
        %s1549 = scalar_lea.vmem %s4, %s1548
        // Predicated region
        $region41: #{unet_basic_forward.1} parent=35 // pred_check
          %p1550 = pneg %p123
        $region42: #{unet_basic_forward.1} parent=35 // pred_check_branch
          %1552 = sbr.rel (%p1550) target = $region44
        $region43: #{unet_basic_forward.1} parent=35 // pred_region
          _
        $region44: #{unet_basic_forward.1} parent=35 // pred_fallthru
          _
      $region36: #{unet_basic_forward.1} parent=5 // pred_fallthru
        _
      %p1553 = scmp.le.s32.totalorder 2, %s11
      // Predicated region
      $region45: #{unet_basic_forward.1} parent=5 // pred_check
        %p1554 = pneg %p1553
      $region46: #{unet_basic_forward.1} parent=5 // pred_check_branch
        %1556 = sbr.rel (%p1554) target = $region48
      $region47: #{unet_basic_forward.1} parent=5 // pred_region
        %s1557 = ssub.s32 %s11, 2
        // Predicated region
        $region49: #{unet_basic_forward.1} parent=47 // pred_check
          %p1558 = pneg %p129
        $region50: #{unet_basic_forward.1} parent=47 // pred_check_branch
          %1560 = sbr.rel (%p1558) target = $region52
        $region51: #{unet_basic_forward.1} parent=47 // pred_region
          %p1561 = scmp.lt.s32.totalorder %s17, 1
          %s1562 = scalar_select %p1561, %s17, 1
          %s1563 = smul.addr %s1562, 2
          %s1564 = smul.addr %s1563, 8
          %s1565 = scalar_lea.vmem %s4, %s1564
        $region52: #{unet_basic_forward.1} parent=47 // pred_fallthru
          _
      $region48: #{unet_basic_forward.1} parent=5 // pred_fallthru
        _
    $region6: #{unet_basic_forward.1} parent=1 // loop_footer
      %s15 = sadd.s32 1, %s11
    $region7: #{unet_basic_forward.1} parent=1 // loop_footer_branch
      %10 = sbr.rel target = $region3
    $region8: #{unet_basic_forward.1} parent=1 // loop_exit
      _
    %1566 = vsyncpa [#allocation3], 1
    %s1567 = scalar_lea.sflag [#allocation3], 1
    %1568 = vsyncpa %s1567, 1

</llo_original>
